<compile_context>
chip_gen: v7x
topology: tpu7x:2x2x1
jax: 0.10.0
libtpu: 0.0.40
codegen_flags: <defaults>
</compile_context>

<pallas_src>
import functools

import jax
import jax.numpy as jnp
from jax.experimental import pallas as pl
from jax.experimental.pallas import tpu as pltpu

_LN_EPS = 1e-5  # PyTorch LayerNorm default


# ----------------------------- Pallas kernels -----------------------------

def _attn_branch_kernel(x_ref, wqkv_ref, wlast_ref, bqkv_ref, gqkv_ref,
                        betaqkv_ref, plast_ref, o_ref,
                        vq_ref, vk_ref, vv_ref, va_ref, vl_ref, attn_ref,
                        *, tau, thr, heads, qk_scale):
    """Fused spiking_self_attention branch + residual for one (batch-tile, t).

    grid = (B_tiles ["parallel"], T ["arbitrary", innermost]).  The five LIF
    membrane potentials persist in VMEM scratch across the T axis.
    """
    bb, _, seq, dim = x_ref.shape
    rows = bb * seq
    dh = dim // heads
    inv_tau = 1.0 / tau
    t = pl.program_id(1)

    @pl.when(t == 0)
    def _():
        vq_ref[...] = jnp.zeros_like(vq_ref)
        vk_ref[...] = jnp.zeros_like(vk_ref)
        vv_ref[...] = jnp.zeros_like(vv_ref)
        va_ref[...] = jnp.zeros_like(va_ref)
        vl_ref[...] = jnp.zeros_like(vl_ref)

    x = x_ref[...].reshape(rows, dim)                 # f32 rows of this tile
    x_bf = x.astype(jnp.bfloat16)                     # hoisted: one cast only

    def layer_norm(y, gamma, beta):
        mean = jnp.mean(y, axis=-1, keepdims=True)
        var = jnp.mean(jnp.square(y - mean), axis=-1, keepdims=True)
        return (y - mean) * jax.lax.rsqrt(var + _LN_EPS) * gamma + beta

    def lif(v_ref, y, threshold):
        # decay_input=True, v_reset=0:  v <- v + (y - v)/tau ; fire ; hard reset.
        v = v_ref[...] + (y - v_ref[...]) * inv_tau
        fire = v >= threshold
        v_ref[...] = jnp.where(fire, 0.0, v)
        return fire.astype(jnp.float32)

    # Fused q/k/v projection: ONE (rows, D) @ (D, 3D) bf16 MXU call, f32 acc.
    qkv = (jnp.dot(x_bf, wqkv_ref[...], preferred_element_type=jnp.float32)
           + bqkv_ref[...])
    gam = gqkv_ref[...]
    bet = betaqkv_ref[...]

    def proj_spikes(idx, v_ref):
        sl = slice(idx * dim, (idx + 1) * dim)
        return lif(v_ref, layer_norm(qkv[:, sl], gam[:, sl], bet[:, sl]), thr)

    # Spikes are exactly 0/1 so bf16 matmul operands are lossless.
    q3 = proj_spikes(0, vq_ref).reshape(bb, seq, dim).astype(jnp.bfloat16)
    k3 = proj_spikes(1, vk_ref).reshape(bb, seq, dim).astype(jnp.bfloat16)
    v3 = proj_spikes(2, vv_ref).reshape(bb, seq, dim).astype(jnp.bfloat16)

    # Spiking attention (q @ k^T) @ v per head, batched over the batch tile:
    # dot_general contracts the trailing axes (no materialized k^T) and each
    # per-head result lands in a column slice of the VMEM scratch buffer, so
    # there is no jnp.concatenate / per-(batch,head) unroll.
    # TODO(synk): on v5e/v6e an int8 MXU path for these 0/1-spike matmuls
    # would be exact and faster; kept bf16 for portability (v7x has no int MXU).
    for h in range(heads):
        sl = slice(h * dh, (h + 1) * dh)
        qh, kh, vh = q3[:, :, sl], k3[:, :, sl], v3[:, :, sl]
        s = jax.lax.dot_general(qh, kh, (((2,), (2,)), ((0,), (0,))),
                                preferred_element_type=jnp.float32)   # (bb,L,L)
        oh = jax.lax.dot_general(s.astype(jnp.bfloat16), vh,
                                 (((2,), (1,)), ((0,), (0,))),
                                 preferred_element_type=jnp.float32)  # (bb,L,dh)
        attn_ref[:, :, sl] = oh
    attn = attn_ref[...].reshape(rows, dim) * qk_scale

    a_spk = lif(va_ref, attn, thr * 0.5)              # attn_lif: common_thr / 2
    y = (jnp.dot(a_spk.astype(jnp.bfloat16), wlast_ref[...],
                 preferred_element_type=jnp.float32) + plast_ref[0:1, :])
    last = lif(vl_ref, layer_norm(y, plast_ref[1:2, :], plast_ref[2:3, :]), thr)

    # Residual fold: block does x = x + attn(x).
    o_ref[...] = (x + last).reshape(bb, 1, seq, dim)


def _mlp_branch_kernel(x_ref, w1_ref, p1_ref, w2_ref, p2_ref, o_ref,
                       v1_ref, v2_ref, *, tau, thr):
    """Fused mlp branch (fc1+LN+LIF, fc2+LN+LIF) + residual."""
    bb, _, seq, dim = x_ref.shape
    rows = bb * seq
    inv_tau = 1.0 / tau
    t = pl.program_id(1)

    @pl.when(t == 0)
    def _():
        v1_ref[...] = jnp.zeros_like(v1_ref)
        v2_ref[...] = jnp.zeros_like(v2_ref)

    x = x_ref[...].reshape(rows, dim)

    def lin_ln(xin_bf, w, p):
        y = jnp.dot(xin_bf, w, preferred_element_type=jnp.float32) + p[0:1, :]
        mean = jnp.mean(y, axis=-1, keepdims=True)
        var = jnp.mean(jnp.square(y - mean), axis=-1, keepdims=True)
        return (y - mean) * jax.lax.rsqrt(var + _LN_EPS) * p[1:2, :] + p[2:3, :]

    def lif(v_ref, y, threshold):
        v = v_ref[...] + (y - v_ref[...]) * inv_tau
        fire = v >= threshold
        v_ref[...] = jnp.where(fire, 0.0, v)
        return fire.astype(jnp.float32)

    h = lif(v1_ref, lin_ln(x.astype(jnp.bfloat16), w1_ref[...], p1_ref[...]), thr)
    y = lif(v2_ref, lin_ln(h.astype(jnp.bfloat16), w2_ref[...], p2_ref[...]), thr)

    o_ref[...] = (x + y).reshape(bb, 1, seq, dim)     # x = x + mlp(x)


# --------------------------- VMEM-aware tiling -----------------------------

def _vmem_capacity_bytes():
    try:
        cap = int(pltpu.get_tpu_info().vmem_capacity_bytes)
        return max(cap, 32 << 20)
    except Exception:
        return 64 << 20        # conservative default (v7x per-core VMEM)


def _branch_footprints(bb, L, D, H, heads):
    """Approximate per-grid-step VMEM footprint (bytes) of each fused branch."""
    rows = bb * L
    act = rows * D * 4
    attn = (2 * 2 * act                          # in + out blocks, double-buffered
            + 2 * (D * 3 * D + D * D) * 2        # bf16 qkv + last weights (2 bufs)
            + 5 * rows * D * 4                   # membrane scratch
            + rows * D * 4                       # per-head attention scratch
            + rows * 3 * D * 4                   # live fused-projection output
            + bb * heads * L * L * 4)            # score tiles
    mlp = (2 * 2 * act
           + 2 * (D * H + H * D) * 2
           + rows * H * 4 + rows * D * 4         # membranes
           + rows * H * 4)                       # live fc1 output
    return attn, mlp


def _pick_batch_tile(B, L, D, H, heads, vmem_cap):
    """Largest batch tile whose footprint fits ~70% of VMEM; prefer an even
    number of parallel grid blocks (v7x has 2 TensorCores)."""
    usable = int(vmem_cap * 0.7)

    def fits(bb):
        a, m = _branch_footprints(bb, L, D, H, heads)
        return max(a, m) <= usable

    divisors = [d for d in range(1, B + 1) if B % d == 0]
    feasible = [d for d in divisors if fits(d)] or [1]
    best = max(feasible)
    if (B // best) % 2 == 1:
        even = [d for d in feasible if (B // d) % 2 == 0]
        if even:
            cand = max(even)
            if cand * 2 >= best:       # don't shrink the tile by more than 2x
                best = cand
    return best


def _vmem_limit_bytes(bb, L, D, H, heads, vmem_cap):
    a, m = _branch_footprints(bb, L, D, H, heads)
    need = max(a, m)
    hi = max(vmem_cap - (8 << 20), 32 << 20)     # leave compiler headroom
    return int(min(hi, max(2 * need, 32 << 20)))


# ------------------------------ wrappers -----------------------------------

def attn_branch(x, wqkv, wlast, bqkv, gqkv, betaqkv, plast, *,
                tau, thr, heads, qk_scale, batch_tile, vmem_limit):
    B, T, L, D = x.shape
    bb = batch_tile
    rows = bb * L
    act_spec = pl.BlockSpec((bb, 1, L, D), lambda i, t: (i, t, 0, 0))

    def const_spec(shape):
        # Constant operands (fetched once; could be single-buffered with
        # pipeline_mode=pl.Buffered(1) to halve their VMEM footprint).
        return pl.BlockSpec(shape, lambda i, t: (0,) * len(shape))

    return pl.pallas_call(
        functools.partial(_attn_branch_kernel, tau=tau, thr=thr,
                          heads=heads, qk_scale=qk_scale),
        out_shape=jax.ShapeDtypeStruct((B, T, L, D), jnp.float32),
        grid=(B // bb, T),
        in_specs=[
            act_spec,
            const_spec((D, 3 * D)),   # fused q/k/v weight (bf16)
            const_spec((D, D)),       # last weight (bf16)
            const_spec((1, 3 * D)),   # q/k/v biases
            const_spec((1, 3 * D)),   # q/k/v LN gammas
            const_spec((1, 3 * D)),   # q/k/v LN betas
            const_spec((3, D)),       # last bias / gamma / beta
        ],
        out_specs=act_spec,
        scratch_shapes=[pltpu.VMEM((rows, D), jnp.float32) for _ in range(5)]
                       + [pltpu.VMEM((bb, L, D), jnp.float32)],
        input_output_aliases={0: 0},
        compiler_params=pltpu.CompilerParams(
            dimension_semantics=("parallel", "arbitrary"),
            vmem_limit_bytes=vmem_limit),
    )(x, wqkv, wlast, bqkv, gqkv, betaqkv, plast)


def mlp_branch(x, w1, p1, w2, p2, *, tau, thr, batch_tile, vmem_limit):
    B, T, L, D = x.shape
    H = w1.shape[1]
    bb = batch_tile
    rows = bb * L
    act_spec = pl.BlockSpec((bb, 1, L, D), lambda i, t: (i, t, 0, 0))

    def const_spec(shape):
        return pl.BlockSpec(shape, lambda i, t: (0,) * len(shape))

    return pl.pallas_call(
        functools.partial(_mlp_branch_kernel, tau=tau, thr=thr),
        out_shape=jax.ShapeDtypeStruct((B, T, L, D), jnp.float32),
        grid=(B // bb, T),
        in_specs=[
            act_spec,
            const_spec((D, H)),   # fc1 W (bf16)
            const_spec((3, H)),   # fc1 bias / ln1 gamma / ln1 beta
            const_spec((H, D)),   # fc2 W (bf16)
            const_spec((3, D)),   # fc2 bias / ln2 gamma / ln2 beta
        ],
        out_specs=act_spec,
        scratch_shapes=[pltpu.VMEM((rows, H), jnp.float32),
                        pltpu.VMEM((rows, D), jnp.float32)],
        input_output_aliases={0: 0},
        compiler_params=pltpu.CompilerParams(
            dimension_semantics=("parallel", "arbitrary"),
            vmem_limit_bytes=vmem_limit),
    )(x, w1, p1, w2, p2)


# ------------------------------ module glue -------------------------------

def init_params(key, dim, hidden):
    def lin(k, din, dout):
        kw, kb = jax.random.split(k)
        w = jax.random.normal(kw, (din, dout), jnp.float32) * 0.05
        b = jax.random.normal(kb, (dout,), jnp.float32) * 0.05
        return w, b

    params = {}
    keys = jax.random.split(key, 6)
    for i, n in enumerate(["q", "k", "v", "last"]):
        w, b = lin(keys[i], dim, dim)
        params[f"{n}_w"], params[f"{n}_b"] = w, b
        params[f"{n}_g"] = jnp.ones((dim,), jnp.float32)      # LayerNorm gamma
        params[f"{n}_beta"] = jnp.zeros((dim,), jnp.float32)  # LayerNorm beta
    params["fc1_w"], params["fc1_b"] = lin(keys[4], dim, hidden)
    params["ln1_g"] = jnp.ones((hidden,), jnp.float32)
    params["ln1_b"] = jnp.zeros((hidden,), jnp.float32)
    params["fc2_w"], params["fc2_b"] = lin(keys[5], hidden, dim)
    params["ln2_g"] = jnp.ones((dim,), jnp.float32)
    params["ln2_b"] = jnp.zeros((dim,), jnp.float32)
    return params


def block_forward(x, params, *, tau, common_thr, heads, qk_scale,
                  batch_tile=None):
    B, T, L, D = x.shape
    H = params["fc1_w"].shape[1]
    assert D % heads == 0
    # bf16 cast of the integer score tile is exact only while per-head spike
    # dot products stay <= 256.
    assert D // heads <= 256

    vmem_cap = _vmem_capacity_bytes()
    if batch_tile is None:
        batch_tile = _pick_batch_tile(B, L, D, H, heads, vmem_cap)
    vmem_limit = _vmem_limit_bytes(batch_tile, L, D, H, heads, vmem_cap)

    # Attention branch params: q/k/v fused along the output dim (bf16 weights
    # for the MXU; LN / LIF math stays f32 in-kernel).
    wqkv = jnp.concatenate([params["q_w"], params["k_w"], params["v_w"]],
                           axis=1).astype(jnp.bfloat16)                 # (D, 3D)
    bqkv = jnp.concatenate([params["q_b"], params["k_b"], params["v_b"]])[None, :]
    gqkv = jnp.concatenate([params["q_g"], params["k_g"], params["v_g"]])[None, :]
    betaqkv = jnp.concatenate([params["q_beta"], params["k_beta"],
                               params["v_beta"]])[None, :]
    wlast = params["last_w"].astype(jnp.bfloat16)
    plast = jnp.stack([params["last_b"], params["last_g"], params["last_beta"]])

    x = attn_branch(x, wqkv, wlast, bqkv, gqkv, betaqkv, plast,
                    tau=tau, thr=common_thr, heads=heads, qk_scale=qk_scale,
                    batch_tile=batch_tile, vmem_limit=vmem_limit)   # x + attn(x)

    # MLP branch.
    p1 = jnp.stack([params["fc1_b"], params["ln1_g"], params["ln1_b"]])
    p2 = jnp.stack([params["fc2_b"], params["ln2_g"], params["ln2_b"]])
    x = mlp_branch(x, params["fc1_w"].astype(jnp.bfloat16), p1,
                   params["fc2_w"].astype(jnp.bfloat16), p2,
                   tau=tau, thr=common_thr,
                   batch_tile=batch_tile, vmem_limit=vmem_limit)    # x + mlp(x)
    return x


if __name__ == "__main__":
    B, T, L, D, heads = 2, 4, 8, 32, 4
    tau, common_thr, qk_scale = 2.0, 1.0, 0.125

    key = jax.random.PRNGKey(0)
    kx, kp = jax.random.split(key)
    x = jax.random.normal(kx, (B, T, L, D), jnp.float32)
    params = init_params(kp, D, 4 * D)

    fwd = jax.jit(functools.partial(block_forward, tau=tau,
                                    common_thr=common_thr, heads=heads,
                                    qk_scale=qk_scale))
    out = jax.block_until_ready(fwd(x, params))
    assert out.shape == (B, T, L, D) and out.dtype == jnp.float32
    assert bool(jnp.all(jnp.isfinite(out)))
    print("KERNEL_OK")
</pallas_src>

<mosaic_0001>
module attributes {stable_mosaic.version = 11 : i64} {
  func.func @_mlp_branch_kernel(%arg0: i32, %arg1: i32, %arg2: memref<1x1x8x32xf32, #tpu.memory_space<vmem>>, %arg3: memref<32x128xbf16, #tpu.memory_space<vmem>>, %arg4: memref<3x128xf32, #tpu.memory_space<vmem>>, %arg5: memref<128x32xbf16, #tpu.memory_space<vmem>>, %arg6: memref<3x32xf32, #tpu.memory_space<vmem>>, %arg7: memref<1x1x8x32xf32, #tpu.memory_space<vmem>>, %arg8: memref<8x128xf32, #tpu.memory_space<vmem>>, %arg9: memref<8x32xf32, #tpu.memory_space<vmem>>) attributes {dimension_semantics = [#tpu.dimension_semantics<parallel>, #tpu.dimension_semantics<arbitrary>], iteration_bounds = array<i64: 2, 4>, scalar_prefetch = 0 : i64, scratch_operands = 2 : i64, tpu.core_type = #tpu.core_type<tc>, window_params = [{transform_indices = @transform_0, window_bounds = array<i64: 1, 1, 8, 32>}, {pipeline_mode = #tpu.pipeline_mode<synchronous>, transform_indices = @transform_1, window_bounds = array<i64: 32, 128>}, {pipeline_mode = #tpu.pipeline_mode<synchronous>, transform_indices = @transform_2, window_bounds = array<i64: 3, 128>}, {pipeline_mode = #tpu.pipeline_mode<synchronous>, transform_indices = @transform_3, window_bounds = array<i64: 128, 32>}, {pipeline_mode = #tpu.pipeline_mode<synchronous>, transform_indices = @transform_4, window_bounds = array<i64: 3, 32>}, {transform_indices = @transform_5, window_bounds = array<i64: 1, 1, 8, 32>}]} {
    %c0_i32 = arith.constant 0 : i32
    %0 = arith.cmpi eq, %arg1, %c0_i32 : i32
    %1 = arith.extui %0 : i1 to i32
    %c0_i32_0 = arith.constant 0 : i32
    %2 = arith.cmpi ne, %1, %c0_i32_0 : i32
    scf.if %2 {
      %cst_45 = arith.constant 0.000000e+00 : f32
      %96 = vector.broadcast %cst_45 : f32 to vector<8x128xf32>
      %c0_46 = arith.constant 0 : index
      %c0_47 = arith.constant 0 : index
      %97 = vector.load %arg8[%c0_46, %c0_47] : memref<8x128xf32, #tpu.memory_space<vmem>>, vector<8x128xf32>
      tpu.vector_store %arg8[%c0_46, %c0_47], %96 {strides = array<i32>} : memref<8x128xf32, #tpu.memory_space<vmem>>, vector<8x128xf32>,
      %cst_48 = arith.constant 0.000000e+00 : f32
      %98 = vector.broadcast %cst_48 : f32 to vector<8x32xf32>
      %c0_49 = arith.constant 0 : index
      %c0_50 = arith.constant 0 : index
      %99 = vector.load %arg9[%c0_49, %c0_50] : memref<8x32xf32, #tpu.memory_space<vmem>>, vector<8x32xf32>
      tpu.vector_store %arg9[%c0_49, %c0_50], %98 {strides = array<i32>} : memref<8x32xf32, #tpu.memory_space<vmem>>, vector<8x32xf32>,
    } else {
    }
    %c0 = arith.constant 0 : index
    %c0_1 = arith.constant 0 : index
    %c0_2 = arith.constant 0 : index
    %c0_3 = arith.constant 0 : index
    %3 = vector.load %arg2[%c0, %c0_1, %c0_2, %c0_3] : memref<1x1x8x32xf32, #tpu.memory_space<vmem>>, vector<1x1x8x32xf32>
    %4 = vector.shape_cast %3 : vector<1x1x8x32xf32> to vector<8x32xf32>
    %5 = arith.truncf %4 : vector<8x32xf32> to vector<8x32xbf16>
    %c0_4 = arith.constant 0 : index
    %c0_5 = arith.constant 0 : index
    %6 = vector.load %arg3[%c0_4, %c0_5] : memref<32x128xbf16, #tpu.memory_space<vmem>>, vector<32x128xbf16>
    %c0_6 = arith.constant 0 : index
    %c0_7 = arith.constant 0 : index
    %7 = vector.load %arg4[%c0_6, %c0_7] : memref<3x128xf32, #tpu.memory_space<vmem>>, vector<3x128xf32>
    %cst = arith.constant dense<0.000000e+00> : vector<8x128xf32>
    %8 = tpu.matmul %5, %6, %cst {dimension_numbers = #tpu.dot_dimension_numbers<[1], [0], [0], [1], [0, 0, 1, 1], [], []>} : vector<8x32xbf16>, vector<32x128xbf16>, vector<8x128xf32> -> vector<8x128xf32>
    %9 = vector.extract_strided_slice %7 {offsets = [0, 0], sizes = [1, 128], strides = [1, 1]} : vector<3x128xf32> to vector<1x128xf32>
    %10 = vector.broadcast %9 : vector<1x128xf32> to vector<8x128xf32>
    %11 = arith.addf %8, %10 : vector<8x128xf32>
    %cst_8 = arith.constant dense<0.000000e+00> : vector<8xf32>
    %12 = vector.multi_reduction <add>, %11, %cst_8 [1] : vector<8x128xf32> to vector<8xf32>
    %13 = vector.shape_cast %12 : vector<8xf32> to vector<8x1xf32>
    %cst_9 = arith.constant 1.280000e+02 : f32
    %14 = vector.broadcast %cst_9 : f32 to vector<8x1xf32>
    %15 = arith.divf %13, %14 : vector<8x1xf32>
    %16 = vector.broadcast %15 : vector<8x1xf32> to vector<8x128xf32>
    %17 = arith.subf %11, %16 : vector<8x128xf32>
    %18 = arith.mulf %17, %17 : vector<8x128xf32>
    %cst_10 = arith.constant dense<0.000000e+00> : vector<8xf32>
    %19 = vector.multi_reduction <add>, %18, %cst_10 [1] : vector<8x128xf32> to vector<8xf32>
    %20 = vector.shape_cast %19 : vector<8xf32> to vector<8x1xf32>
    %cst_11 = arith.constant 1.280000e+02 : f32
    %21 = vector.broadcast %cst_11 : f32 to vector<8x1xf32>
    %22 = arith.divf %20, %21 : vector<8x1xf32>
    %23 = vector.broadcast %15 : vector<8x1xf32> to vector<8x128xf32>
    %24 = arith.subf %11, %23 : vector<8x128xf32>
    %cst_12 = arith.constant 9.99999974E-6 : f32
    %25 = vector.broadcast %cst_12 : f32 to vector<8x1xf32>
    %26 = arith.addf %22, %25 : vector<8x1xf32>
    %27 = math.rsqrt %26 : vector<8x1xf32>
    %28 = vector.broadcast %27 : vector<8x1xf32> to vector<8x128xf32>
    %29 = arith.mulf %24, %28 : vector<8x128xf32>
    %30 = vector.extract_strided_slice %7 {offsets = [1, 0], sizes = [1, 128], strides = [1, 1]} : vector<3x128xf32> to vector<1x128xf32>
    %31 = vector.broadcast %30 : vector<1x128xf32> to vector<8x128xf32>
    %32 = arith.mulf %29, %31 : vector<8x128xf32>
    %33 = vector.extract_strided_slice %7 {offsets = [2, 0], sizes = [1, 128], strides = [1, 1]} : vector<3x128xf32> to vector<1x128xf32>
    %34 = vector.broadcast %33 : vector<1x128xf32> to vector<8x128xf32>
    %35 = arith.addf %32, %34 : vector<8x128xf32>
    %c0_13 = arith.constant 0 : index
    %c0_14 = arith.constant 0 : index
    %36 = vector.load %arg8[%c0_13, %c0_14] : memref<8x128xf32, #tpu.memory_space<vmem>>, vector<8x128xf32>
    %c0_15 = arith.constant 0 : index
    %c0_16 = arith.constant 0 : index
    %37 = vector.load %arg8[%c0_15, %c0_16] : memref<8x128xf32, #tpu.memory_space<vmem>>, vector<8x128xf32>
    %38 = arith.subf %35, %37 : vector<8x128xf32>
    %cst_17 = arith.constant 5.000000e-01 : f32
    %39 = vector.broadcast %cst_17 : f32 to vector<8x128xf32>
    %40 = arith.mulf %38, %39 : vector<8x128xf32>
    %41 = arith.addf %36, %40 : vector<8x128xf32>
    %cst_18 = arith.constant 1.000000e+00 : f32
    %42 = vector.broadcast %cst_18 : f32 to vector<8x128xf32>
    %43 = arith.cmpf oge, %41, %42 : vector<8x128xf32>
    %cst_19 = arith.constant 0.000000e+00 : f32
    %44 = vector.broadcast %cst_19 : f32 to vector<8x128xf32>
    %45 = arith.select %43, %44, %41 : vector<8x128xi1>, vector<8x128xf32>
    %c0_20 = arith.constant 0 : index
    %c0_21 = arith.constant 0 : index
    %46 = vector.load %arg8[%c0_20, %c0_21] : memref<8x128xf32, #tpu.memory_space<vmem>>, vector<8x128xf32>
    tpu.vector_store %arg8[%c0_20, %c0_21], %45 {strides = array<i32>} : memref<8x128xf32, #tpu.memory_space<vmem>>, vector<8x128xf32>,
    %47 = arith.extui %43 : vector<8x128xi1> to vector<8x128xi32>
    %48 = arith.sitofp %47 : vector<8x128xi32> to vector<8x128xf32>
    %49 = arith.truncf %48 : vector<8x128xf32> to vector<8x128xbf16>
    %c0_22 = arith.constant 0 : index
    %c0_23 = arith.constant 0 : index
    %50 = vector.load %arg5[%c0_22, %c0_23] : memref<128x32xbf16, #tpu.memory_space<vmem>>, vector<128x32xbf16>
    %c0_24 = arith.constant 0 : index
    %c0_25 = arith.constant 0 : index
    %51 = vector.load %arg6[%c0_24, %c0_25] : memref<3x32xf32, #tpu.memory_space<vmem>>, vector<3x32xf32>
    %cst_26 = arith.constant dense<0.000000e+00> : vector<8x32xf32>
    %52 = tpu.matmul %49, %50, %cst_26 {dimension_numbers = #tpu.dot_dimension_numbers<[1], [0], [0], [1], [0, 0, 1, 1], [], []>} : vector<8x128xbf16>, vector<128x32xbf16>, vector<8x32xf32> -> vector<8x32xf32>
    %53 = vector.extract_strided_slice %51 {offsets = [0, 0], sizes = [1, 32], strides = [1, 1]} : vector<3x32xf32> to vector<1x32xf32>
    %54 = vector.broadcast %53 : vector<1x32xf32> to vector<8x32xf32>
    %55 = arith.addf %52, %54 : vector<8x32xf32>
    %cst_27 = arith.constant dense<0.000000e+00> : vector<8xf32>
    %56 = vector.multi_reduction <add>, %55, %cst_27 [1] : vector<8x32xf32> to vector<8xf32>
    %57 = vector.shape_cast %56 : vector<8xf32> to vector<8x1xf32>
    %cst_28 = arith.constant 3.200000e+01 : f32
    %58 = vector.broadcast %cst_28 : f32 to vector<8x1xf32>
    %59 = arith.divf %57, %58 : vector<8x1xf32>
    %60 = vector.broadcast %59 : vector<8x1xf32> to vector<8x32xf32>
    %61 = arith.subf %55, %60 : vector<8x32xf32>
    %62 = arith.mulf %61, %61 : vector<8x32xf32>
    %cst_29 = arith.constant dense<0.000000e+00> : vector<8xf32>
    %63 = vector.multi_reduction <add>, %62, %cst_29 [1] : vector<8x32xf32> to vector<8xf32>
    %64 = vector.shape_cast %63 : vector<8xf32> to vector<8x1xf32>
    %cst_30 = arith.constant 3.200000e+01 : f32
    %65 = vector.broadcast %cst_30 : f32 to vector<8x1xf32>
    %66 = arith.divf %64, %65 : vector<8x1xf32>
    %67 = vector.broadcast %59 : vector<8x1xf32> to vector<8x32xf32>
    %68 = arith.subf %55, %67 : vector<8x32xf32>
    %cst_31 = arith.constant 9.99999974E-6 : f32
    %69 = vector.broadcast %cst_31 : f32 to vector<8x1xf32>
    %70 = arith.addf %66, %69 : vector<8x1xf32>
    %71 = math.rsqrt %70 : vector<8x1xf32>
    %72 = vector.broadcast %71 : vector<8x1xf32> to vector<8x32xf32>
    %73 = arith.mulf %68, %72 : vector<8x32xf32>
    %74 = vector.extract_strided_slice %51 {offsets = [1, 0], sizes = [1, 32], strides = [1, 1]} : vector<3x32xf32> to vector<1x32xf32>
    %75 = vector.broadcast %74 : vector<1x32xf32> to vector<8x32xf32>
    %76 = arith.mulf %73, %75 : vector<8x32xf32>
    %77 = vector.extract_strided_slice %51 {offsets = [2, 0], sizes = [1, 32], strides = [1, 1]} : vector<3x32xf32> to vector<1x32xf32>
    %78 = vector.broadcast %77 : vector<1x32xf32> to vector<8x32xf32>
    %79 = arith.addf %76, %78 : vector<8x32xf32>
    %c0_32 = arith.constant 0 : index
    %c0_33 = arith.constant 0 : index
    %80 = vector.load %arg9[%c0_32, %c0_33] : memref<8x32xf32, #tpu.memory_space<vmem>>, vector<8x32xf32>
    %c0_34 = arith.constant 0 : index
    %c0_35 = arith.constant 0 : index
    %81 = vector.load %arg9[%c0_34, %c0_35] : memref<8x32xf32, #tpu.memory_space<vmem>>, vector<8x32xf32>
    %82 = arith.subf %79, %81 : vector<8x32xf32>
    %cst_36 = arith.constant 5.000000e-01 : f32
    %83 = vector.broadcast %cst_36 : f32 to vector<8x32xf32>
    %84 = arith.mulf %82, %83 : vector<8x32xf32>
    %85 = arith.addf %80, %84 : vector<8x32xf32>
    %cst_37 = arith.constant 1.000000e+00 : f32
    %86 = vector.broadcast %cst_37 : f32 to vector<8x32xf32>
    %87 = arith.cmpf oge, %85, %86 : vector<8x32xf32>
    %cst_38 = arith.constant 0.000000e+00 : f32
    %88 = vector.broadcast %cst_38 : f32 to vector<8x32xf32>
    %89 = arith.select %87, %88, %85 : vector<8x32xi1>, vector<8x32xf32>
    %c0_39 = arith.constant 0 : index
    %c0_40 = arith.constant 0 : index
    %90 = vector.load %arg9[%c0_39, %c0_40] : memref<8x32xf32, #tpu.memory_space<vmem>>, vector<8x32xf32>
    tpu.vector_store %arg9[%c0_39, %c0_40], %89 {strides = array<i32>} : memref<8x32xf32, #tpu.memory_space<vmem>>, vector<8x32xf32>,
    %91 = arith.extui %87 : vector<8x32xi1> to vector<8x32xi32>
    %92 = arith.sitofp %91 : vector<8x32xi32> to vector<8x32xf32>
    %93 = arith.addf %4, %92 : vector<8x32xf32>
    %94 = vector.shape_cast %93 : vector<8x32xf32> to vector<1x1x8x32xf32>
    %c0_41 = arith.constant 0 : index
    %c0_42 = arith.constant 0 : index
    %c0_43 = arith.constant 0 : index
    %c0_44 = arith.constant 0 : index
    %95 = vector.load %arg7[%c0_41, %c0_42, %c0_43, %c0_44] : memref<1x1x8x32xf32, #tpu.memory_space<vmem>>, vector<1x1x8x32xf32>
    tpu.vector_store %arg7[%c0_41, %c0_42, %c0_43, %c0_44], %94 {strides = array<i32>} : memref<1x1x8x32xf32, #tpu.memory_space<vmem>>, vector<1x1x8x32xf32>,
    return
  }
  func.func @transform_0(%arg0: i32, %arg1: i32) -> (i32, i32, i32, i32) {
    %c0_i32 = arith.constant 0 : i32
    %c0_i32_0 = arith.constant 0 : i32
    %c0_i32_1 = arith.constant 0 : i32
    return %arg0, %arg1, %c0_i32, %c0_i32_0 : i32, i32, i32, i32
  }
  func.func @transform_1(%arg0: i32, %arg1: i32) -> (i32, i32) {
    %c0_i32 = arith.constant 0 : i32
    %c0_i32_0 = arith.constant 0 : i32
    %c0_i32_1 = arith.constant 0 : i32
    return %c0_i32, %c0_i32_0 : i32, i32
  }
  func.func @transform_2(%arg0: i32, %arg1: i32) -> (i32, i32) {
    %c0_i32 = arith.constant 0 : i32
    %c0_i32_0 = arith.constant 0 : i32
    %c0_i32_1 = arith.constant 0 : i32
    return %c0_i32, %c0_i32_0 : i32, i32
  }
  func.func @transform_3(%arg0: i32, %arg1: i32) -> (i32, i32) {
    %c0_i32 = arith.constant 0 : i32
    %c0_i32_0 = arith.constant 0 : i32
    %c0_i32_1 = arith.constant 0 : i32
    return %c0_i32, %c0_i32_0 : i32, i32
  }
  func.func @transform_4(%arg0: i32, %arg1: i32) -> (i32, i32) {
    %c0_i32 = arith.constant 0 : i32
    %c0_i32_0 = arith.constant 0 : i32
    %c0_i32_1 = arith.constant 0 : i32
    return %c0_i32, %c0_i32_0 : i32, i32
  }
  func.func @transform_5(%arg0: i32, %arg1: i32) -> (i32, i32, i32, i32) {
    %c0_i32 = arith.constant 0 : i32
    %c0_i32_0 = arith.constant 0 : i32
    %c0_i32_1 = arith.constant 0 : i32
    return %arg0, %arg1, %c0_i32, %c0_i32_0 : i32, i32, i32, i32
  }
}

module attributes {stable_mosaic.version = 11 : i64} {
  func.func @_attn_branch_kernel(%arg0: i32, %arg1: i32, %arg2: memref<1x1x8x32xf32, #tpu.memory_space<vmem>>, %arg3: memref<32x96xbf16, #tpu.memory_space<vmem>>, %arg4: memref<32x32xbf16, #tpu.memory_space<vmem>>, %arg5: memref<1x96xf32, #tpu.memory_space<vmem>>, %arg6: memref<1x96xf32, #tpu.memory_space<vmem>>, %arg7: memref<1x96xf32, #tpu.memory_space<vmem>>, %arg8: memref<3x32xf32, #tpu.memory_space<vmem>>, %arg9: memref<1x1x8x32xf32, #tpu.memory_space<vmem>>, %arg10: memref<8x32xf32, #tpu.memory_space<vmem>>, %arg11: memref<8x32xf32, #tpu.memory_space<vmem>>, %arg12: memref<8x32xf32, #tpu.memory_space<vmem>>, %arg13: memref<8x32xf32, #tpu.memory_space<vmem>>, %arg14: memref<8x32xf32, #tpu.memory_space<vmem>>, %arg15: memref<1x8x32xf32, #tpu.memory_space<vmem>>) attributes {dimension_semantics = [#tpu.dimension_semantics<parallel>, #tpu.dimension_semantics<arbitrary>], iteration_bounds = array<i64: 2, 4>, scalar_prefetch = 0 : i64, scratch_operands = 6 : i64, tpu.core_type = #tpu.core_type<tc>, window_params = [{transform_indices = @transform_0, window_bounds = array<i64: 1, 1, 8, 32>}, {pipeline_mode = #tpu.pipeline_mode<synchronous>, transform_indices = @transform_1, window_bounds = array<i64: 32, 96>}, {pipeline_mode = #tpu.pipeline_mode<synchronous>, transform_indices = @transform_2, window_bounds = array<i64: 32, 32>}, {pipeline_mode = #tpu.pipeline_mode<synchronous>, transform_indices = @transform_3, window_bounds = array<i64: 1, 96>}, {pipeline_mode = #tpu.pipeline_mode<synchronous>, transform_indices = @transform_4, window_bounds = array<i64: 1, 96>}, {pipeline_mode = #tpu.pipeline_mode<synchronous>, transform_indices = @transform_5, window_bounds = array<i64: 1, 96>}, {pipeline_mode = #tpu.pipeline_mode<synchronous>, transform_indices = @transform_6, window_bounds = array<i64: 3, 32>}, {transform_indices = @transform_7, window_bounds = array<i64: 1, 1, 8, 32>}]} {
    %c0_i32 = arith.constant 0 : i32
    %0 = arith.cmpi eq, %arg1, %c0_i32 : i32
    %1 = arith.extui %0 : i1 to i32
    %c0_i32_0 = arith.constant 0 : i32
    %2 = arith.cmpi ne, %1, %c0_i32_0 : i32
    scf.if %2 {
      %cst_109 = arith.constant 0.000000e+00 : f32
      %224 = vector.broadcast %cst_109 : f32 to vector<8x32xf32>
      %c0_110 = arith.constant 0 : index
      %c0_111 = arith.constant 0 : index
      %225 = vector.load %arg10[%c0_110, %c0_111] : memref<8x32xf32, #tpu.memory_space<vmem>>, vector<8x32xf32>
      tpu.vector_store %arg10[%c0_110, %c0_111], %224 {strides = array<i32>} : memref<8x32xf32, #tpu.memory_space<vmem>>, vector<8x32xf32>,
      %cst_112 = arith.constant 0.000000e+00 : f32
      %226 = vector.broadcast %cst_112 : f32 to vector<8x32xf32>
      %c0_113 = arith.constant 0 : index
      %c0_114 = arith.constant 0 : index
      %227 = vector.load %arg11[%c0_113, %c0_114] : memref<8x32xf32, #tpu.memory_space<vmem>>, vector<8x32xf32>
      tpu.vector_store %arg11[%c0_113, %c0_114], %226 {strides = array<i32>} : memref<8x32xf32, #tpu.memory_space<vmem>>, vector<8x32xf32>,
      %cst_115 = arith.constant 0.000000e+00 : f32
      %228 = vector.broadcast %cst_115 : f32 to vector<8x32xf32>
      %c0_116 = arith.constant 0 : index
      %c0_117 = arith.constant 0 : index
      %229 = vector.load %arg12[%c0_116, %c0_117] : memref<8x32xf32, #tpu.memory_space<vmem>>, vector<8x32xf32>
      tpu.vector_store %arg12[%c0_116, %c0_117], %228 {strides = array<i32>} : memref<8x32xf32, #tpu.memory_space<vmem>>, vector<8x32xf32>,
      %cst_118 = arith.constant 0.000000e+00 : f32
      %230 = vector.broadcast %cst_118 : f32 to vector<8x32xf32>
      %c0_119 = arith.constant 0 : index
      %c0_120 = arith.constant 0 : index
      %231 = vector.load %arg13[%c0_119, %c0_120] : memref<8x32xf32, #tpu.memory_space<vmem>>, vector<8x32xf32>
      tpu.vector_store %arg13[%c0_119, %c0_120], %230 {strides = array<i32>} : memref<8x32xf32, #tpu.memory_space<vmem>>, vector<8x32xf32>,
      %cst_121 = arith.constant 0.000000e+00 : f32
      %232 = vector.broadcast %cst_121 : f32 to vector<8x32xf32>
      %c0_122 = arith.constant 0 : index
      %c0_123 = arith.constant 0 : index
      %233 = vector.load %arg14[%c0_122, %c0_123] : memref<8x32xf32, #tpu.memory_space<vmem>>, vector<8x32xf32>
      tpu.vector_store %arg14[%c0_122, %c0_123], %232 {strides = array<i32>} : memref<8x32xf32, #tpu.memory_space<vmem>>, vector<8x32xf32>,
    } else {
    }
    %c0 = arith.constant 0 : index
    %c0_1 = arith.constant 0 : index
    %c0_2 = arith.constant 0 : index
    %c0_3 = arith.constant 0 : index
    %3 = vector.load %arg2[%c0, %c0_1, %c0_2, %c0_3] : memref<1x1x8x32xf32, #tpu.memory_space<vmem>>, vector<1x1x8x32xf32>
    %4 = vector.shape_cast %3 : vector<1x1x8x32xf32> to vector<8x32xf32>
    %5 = arith.truncf %4 : vector<8x32xf32> to vector<8x32xbf16>
    %c0_4 = arith.constant 0 : index
    %c0_5 = arith.constant 0 : index
    %6 = vector.load %arg3[%c0_4, %c0_5] : memref<32x96xbf16, #tpu.memory_space<vmem>>, vector<32x96xbf16>
    %cst = arith.constant dense<0.000000e+00> : vector<8x96xf32>
    %7 = tpu.matmul %5, %6, %cst {dimension_numbers = #tpu.dot_dimension_numbers<[1], [0], [0], [1], [0, 0, 1, 1], [], []>} : vector<8x32xbf16>, vector<32x96xbf16>, vector<8x96xf32> -> vector<8x96xf32>
    %c0_6 = arith.constant 0 : index
    %c0_7 = arith.constant 0 : index
    %8 = vector.load %arg5[%c0_6, %c0_7] : memref<1x96xf32, #tpu.memory_space<vmem>>, vector<1x96xf32>
    %9 = vector.broadcast %8 : vector<1x96xf32> to vector<8x96xf32>
    %10 = arith.addf %7, %9 : vector<8x96xf32>
    %c0_8 = arith.constant 0 : index
    %c0_9 = arith.constant 0 : index
    %11 = vector.load %arg6[%c0_8, %c0_9] : memref<1x96xf32, #tpu.memory_space<vmem>>, vector<1x96xf32>
    %c0_10 = arith.constant 0 : index
    %c0_11 = arith.constant 0 : index
    %12 = vector.load %arg7[%c0_10, %c0_11] : memref<1x96xf32, #tpu.memory_space<vmem>>, vector<1x96xf32>
    %13 = vector.extract_strided_slice %10 {offsets = [0, 0], sizes = [8, 32], strides = [1, 1]} : vector<8x96xf32> to vector<8x32xf32>
    %14 = vector.extract_strided_slice %11 {offsets = [0, 0], sizes = [1, 32], strides = [1, 1]} : vector<1x96xf32> to vector<1x32xf32>
    %15 = vector.extract_strided_slice %12 {offsets = [0, 0], sizes = [1, 32], strides = [1, 1]} : vector<1x96xf32> to vector<1x32xf32>
    %cst_12 = arith.constant dense<0.000000e+00> : vector<8xf32>
    %16 = vector.multi_reduction <add>, %13, %cst_12 [1] : vector<8x32xf32> to vector<8xf32>
    %17 = vector.shape_cast %16 : vector<8xf32> to vector<8x1xf32>
    %cst_13 = arith.constant 3.200000e+01 : f32
    %18 = vector.broadcast %cst_13 : f32 to vector<8x1xf32>
    %19 = arith.divf %17, %18 : vector<8x1xf32>
    %20 = vector.broadcast %19 : vector<8x1xf32> to vector<8x32xf32>
    %21 = arith.subf %13, %20 : vector<8x32xf32>
    %22 = arith.mulf %21, %21 : vector<8x32xf32>
    %cst_14 = arith.constant dense<0.000000e+00> : vector<8xf32>
    %23 = vector.multi_reduction <add>, %22, %cst_14 [1] : vector<8x32xf32> to vector<8xf32>
    %24 = vector.shape_cast %23 : vector<8xf32> to vector<8x1xf32>
    %cst_15 = arith.constant 3.200000e+01 : f32
    %25 = vector.broadcast %cst_15 : f32 to vector<8x1xf32>
    %26 = arith.divf %24, %25 : vector<8x1xf32>
    %27 = vector.broadcast %19 : vector<8x1xf32> to vector<8x32xf32>
    %28 = arith.subf %13, %27 : vector<8x32xf32>
    %cst_16 = arith.constant 9.99999974E-6 : f32
    %29 = vector.broadcast %cst_16 : f32 to vector<8x1xf32>
    %30 = arith.addf %26, %29 : vector<8x1xf32>
    %31 = math.rsqrt %30 : vector<8x1xf32>
    %32 = vector.broadcast %31 : vector<8x1xf32> to vector<8x32xf32>
    %33 = arith.mulf %28, %32 : vector<8x32xf32>
    %34 = vector.broadcast %14 : vector<1x32xf32> to vector<8x32xf32>
    %35 = arith.mulf %33, %34 : vector<8x32xf32>
    %36 = vector.broadcast %15 : vector<1x32xf32> to vector<8x32xf32>
    %37 = arith.addf %35, %36 : vector<8x32xf32>
    %c0_17 = arith.constant 0 : index
    %c0_18 = arith.constant 0 : index
    %38 = vector.load %arg10[%c0_17, %c0_18] : memref<8x32xf32, #tpu.memory_space<vmem>>, vector<8x32xf32>
    %c0_19 = arith.constant 0 : index
    %c0_20 = arith.constant 0 : index
    %39 = vector.load %arg10[%c0_19, %c0_20] : memref<8x32xf32, #tpu.memory_space<vmem>>, vector<8x32xf32>
    %40 = arith.subf %37, %39 : vector<8x32xf32>
    %cst_21 = arith.constant 5.000000e-01 : f32
    %41 = vector.broadcast %cst_21 : f32 to vector<8x32xf32>
    %42 = arith.mulf %40, %41 : vector<8x32xf32>
    %43 = arith.addf %38, %42 : vector<8x32xf32>
    %cst_22 = arith.constant 1.000000e+00 : f32
    %44 = vector.broadcast %cst_22 : f32 to vector<8x32xf32>
    %45 = arith.cmpf oge, %43, %44 : vector<8x32xf32>
    %cst_23 = arith.constant 0.000000e+00 : f32
    %46 = vector.broadcast %cst_23 : f32 to vector<8x32xf32>
    %47 = arith.select %45, %46, %43 : vector<8x32xi1>, vector<8x32xf32>
    %c0_24 = arith.constant 0 : index
    %c0_25 = arith.constant 0 : index
    %48 = vector.load %arg10[%c0_24, %c0_25] : memref<8x32xf32, #tpu.memory_space<vmem>>, vector<8x32xf32>
    tpu.vector_store %arg10[%c0_24, %c0_25], %47 {strides = array<i32>} : memref<8x32xf32, #tpu.memory_space<vmem>>, vector<8x32xf32>,
    %49 = arith.extui %45 : vector<8x32xi1> to vector<8x32xi32>
    %50 = arith.sitofp %49 : vector<8x32xi32> to vector<8x32xf32>
    %51 = vector.shape_cast %50 : vector<8x32xf32> to vector<1x8x32xf32>
    %52 = arith.truncf %51 : vector<1x8x32xf32> to vector<1x8x32xbf16>
    %53 = vector.extract_strided_slice %10 {offsets = [0, 32], sizes = [8, 32], strides = [1, 1]} : vector<8x96xf32> to vector<8x32xf32>
    %54 = vector.extract_strided_slice %11 {offsets = [0, 32], sizes = [1, 32], strides = [1, 1]} : vector<1x96xf32> to vector<1x32xf32>
    %55 = vector.extract_strided_slice %12 {offsets = [0, 32], sizes = [1, 32], strides = [1, 1]} : vector<1x96xf32> to vector<1x32xf32>
    %cst_26 = arith.constant dense<0.000000e+00> : vector<8xf32>
    %56 = vector.multi_reduction <add>, %53, %cst_26 [1] : vector<8x32xf32> to vector<8xf32>
    %57 = vector.shape_cast %56 : vector<8xf32> to vector<8x1xf32>
    %cst_27 = arith.constant 3.200000e+01 : f32
    %58 = vector.broadcast %cst_27 : f32 to vector<8x1xf32>
    %59 = arith.divf %57, %58 : vector<8x1xf32>
    %60 = vector.broadcast %59 : vector<8x1xf32> to vector<8x32xf32>
    %61 = arith.subf %53, %60 : vector<8x32xf32>
    %62 = arith.mulf %61, %61 : vector<8x32xf32>
    %cst_28 = arith.constant dense<0.000000e+00> : vector<8xf32>
    %63 = vector.multi_reduction <add>, %62, %cst_28 [1] : vector<8x32xf32> to vector<8xf32>
    %64 = vector.shape_cast %63 : vector<8xf32> to vector<8x1xf32>
    %cst_29 = arith.constant 3.200000e+01 : f32
    %65 = vector.broadcast %cst_29 : f32 to vector<8x1xf32>
    %66 = arith.divf %64, %65 : vector<8x1xf32>
    %67 = vector.broadcast %59 : vector<8x1xf32> to vector<8x32xf32>
    %68 = arith.subf %53, %67 : vector<8x32xf32>
    %cst_30 = arith.constant 9.99999974E-6 : f32
    %69 = vector.broadcast %cst_30 : f32 to vector<8x1xf32>
    %70 = arith.addf %66, %69 : vector<8x1xf32>
    %71 = math.rsqrt %70 : vector<8x1xf32>
    %72 = vector.broadcast %71 : vector<8x1xf32> to vector<8x32xf32>
    %73 = arith.mulf %68, %72 : vector<8x32xf32>
    %74 = vector.broadcast %54 : vector<1x32xf32> to vector<8x32xf32>
    %75 = arith.mulf %73, %74 : vector<8x32xf32>
    %76 = vector.broadcast %55 : vector<1x32xf32> to vector<8x32xf32>
    %77 = arith.addf %75, %76 : vector<8x32xf32>
    %c0_31 = arith.constant 0 : index
    %c0_32 = arith.constant 0 : index
    %78 = vector.load %arg11[%c0_31, %c0_32] : memref<8x32xf32, #tpu.memory_space<vmem>>, vector<8x32xf32>
    %c0_33 = arith.constant 0 : index
    %c0_34 = arith.constant 0 : index
    %79 = vector.load %arg11[%c0_33, %c0_34] : memref<8x32xf32, #tpu.memory_space<vmem>>, vector<8x32xf32>
    %80 = arith.subf %77, %79 : vector<8x32xf32>
    %cst_35 = arith.constant 5.000000e-01 : f32
    %81 = vector.broadcast %cst_35 : f32 to vector<8x32xf32>
    %82 = arith.mulf %80, %81 : vector<8x32xf32>
    %83 = arith.addf %78, %82 : vector<8x32xf32>
    %cst_36 = arith.constant 1.000000e+00 : f32
    %84 = vector.broadcast %cst_36 : f32 to vector<8x32xf32>
    %85 = arith.cmpf oge, %83, %84 : vector<8x32xf32>
    %cst_37 = arith.constant 0.000000e+00 : f32
    %86 = vector.broadcast %cst_37 : f32 to vector<8x32xf32>
    %87 = arith.select %85, %86, %83 : vector<8x32xi1>, vector<8x32xf32>
    %c0_38 = arith.constant 0 : index
    %c0_39 = arith.constant 0 : index
    %88 = vector.load %arg11[%c0_38, %c0_39] : memref<8x32xf32, #tpu.memory_space<vmem>>, vector<8x32xf32>
    tpu.vector_store %arg11[%c0_38, %c0_39], %87 {strides = array<i32>} : memref<8x32xf32, #tpu.memory_space<vmem>>, vector<8x32xf32>,
    %89 = arith.extui %85 : vector<8x32xi1> to vector<8x32xi32>
    %90 = arith.sitofp %89 : vector<8x32xi32> to vector<8x32xf32>
    %91 = vector.shape_cast %90 : vector<8x32xf32> to vector<1x8x32xf32>
    %92 = arith.truncf %91 : vector<1x8x32xf32> to vector<1x8x32xbf16>
    %93 = vector.extract_strided_slice %10 {offsets = [0, 64], sizes = [8, 32], strides = [1, 1]} : vector<8x96xf32> to vector<8x32xf32>
    %94 = vector.extract_strided_slice %11 {offsets = [0, 64], sizes = [1, 32], strides = [1, 1]} : vector<1x96xf32> to vector<1x32xf32>
    %95 = vector.extract_strided_slice %12 {offsets = [0, 64], sizes = [1, 32], strides = [1, 1]} : vector<1x96xf32> to vector<1x32xf32>
    %cst_40 = arith.constant dense<0.000000e+00> : vector<8xf32>
    %96 = vector.multi_reduction <add>, %93, %cst_40 [1] : vector<8x32xf32> to vector<8xf32>
    %97 = vector.shape_cast %96 : vector<8xf32> to vector<8x1xf32>
    %cst_41 = arith.constant 3.200000e+01 : f32
    %98 = vector.broadcast %cst_41 : f32 to vector<8x1xf32>
    %99 = arith.divf %97, %98 : vector<8x1xf32>
    %100 = vector.broadcast %99 : vector<8x1xf32> to vector<8x32xf32>
    %101 = arith.subf %93, %100 : vector<8x32xf32>
    %102 = arith.mulf %101, %101 : vector<8x32xf32>
    %cst_42 = arith.constant dense<0.000000e+00> : vector<8xf32>
    %103 = vector.multi_reduction <add>, %102, %cst_42 [1] : vector<8x32xf32> to vector<8xf32>
    %104 = vector.shape_cast %103 : vector<8xf32> to vector<8x1xf32>
    %cst_43 = arith.constant 3.200000e+01 : f32
    %105 = vector.broadcast %cst_43 : f32 to vector<8x1xf32>
    %106 = arith.divf %104, %105 : vector<8x1xf32>
    %107 = vector.broadcast %99 : vector<8x1xf32> to vector<8x32xf32>
    %108 = arith.subf %93, %107 : vector<8x32xf32>
    %cst_44 = arith.constant 9.99999974E-6 : f32
    %109 = vector.broadcast %cst_44 : f32 to vector<8x1xf32>
    %110 = arith.addf %106, %109 : vector<8x1xf32>
    %111 = math.rsqrt %110 : vector<8x1xf32>
    %112 = vector.broadcast %111 : vector<8x1xf32> to vector<8x32xf32>
    %113 = arith.mulf %108, %112 : vector<8x32xf32>
    %114 = vector.broadcast %94 : vector<1x32xf32> to vector<8x32xf32>
    %115 = arith.mulf %113, %114 : vector<8x32xf32>
    %116 = vector.broadcast %95 : vector<1x32xf32> to vector<8x32xf32>
    %117 = arith.addf %115, %116 : vector<8x32xf32>
    %c0_45 = arith.constant 0 : index
    %c0_46 = arith.constant 0 : index
    %118 = vector.load %arg12[%c0_45, %c0_46] : memref<8x32xf32, #tpu.memory_space<vmem>>, vector<8x32xf32>
    %c0_47 = arith.constant 0 : index
    %c0_48 = arith.constant 0 : index
    %119 = vector.load %arg12[%c0_47, %c0_48] : memref<8x32xf32, #tpu.memory_space<vmem>>, vector<8x32xf32>
    %120 = arith.subf %117, %119 : vector<8x32xf32>
    %cst_49 = arith.constant 5.000000e-01 : f32
    %121 = vector.broadcast %cst_49 : f32 to vector<8x32xf32>
    %122 = arith.mulf %120, %121 : vector<8x32xf32>
    %123 = arith.addf %118, %122 : vector<8x32xf32>
    %cst_50 = arith.constant 1.000000e+00 : f32
    %124 = vector.broadcast %cst_50 : f32 to vector<8x32xf32>
    %125 = arith.cmpf oge, %123, %124 : vector<8x32xf32>
    %cst_51 = arith.constant 0.000000e+00 : f32
    %126 = vector.broadcast %cst_51 : f32 to vector<8x32xf32>
    %127 = arith.select %125, %126, %123 : vector<8x32xi1>, vector<8x32xf32>
    %c0_52 = arith.constant 0 : index
    %c0_53 = arith.constant 0 : index
    %128 = vector.load %arg12[%c0_52, %c0_53] : memref<8x32xf32, #tpu.memory_space<vmem>>, vector<8x32xf32>
    tpu.vector_store %arg12[%c0_52, %c0_53], %127 {strides = array<i32>} : memref<8x32xf32, #tpu.memory_space<vmem>>, vector<8x32xf32>,
    %129 = arith.extui %125 : vector<8x32xi1> to vector<8x32xi32>
    %130 = arith.sitofp %129 : vector<8x32xi32> to vector<8x32xf32>
    %131 = vector.shape_cast %130 : vector<8x32xf32> to vector<1x8x32xf32>
    %132 = arith.truncf %131 : vector<1x8x32xf32> to vector<1x8x32xbf16>
    %133 = vector.extract_strided_slice %52 {offsets = [0, 0, 0], sizes = [1, 8, 8], strides = [1, 1, 1]} : vector<1x8x32xbf16> to vector<1x8x8xbf16>
    %134 = vector.extract_strided_slice %92 {offsets = [0, 0, 0], sizes = [1, 8, 8], strides = [1, 1, 1]} : vector<1x8x32xbf16> to vector<1x8x8xbf16>
    %135 = vector.extract_strided_slice %132 {offsets = [0, 0, 0], sizes = [1, 8, 8], strides = [1, 1, 1]} : vector<1x8x32xbf16> to vector<1x8x8xbf16>
    %cst_54 = arith.constant dense<0.000000e+00> : vector<1x8x8xf32>
    %136 = tpu.matmul %133, %134, %cst_54 {dimension_numbers = #tpu.dot_dimension_numbers<[2], [2], [1], [1], [0, 0, 0, 1, 1, 1], [0], [0]>} : vector<1x8x8xbf16>, vector<1x8x8xbf16>, vector<1x8x8xf32> -> vector<1x8x8xf32>
    %137 = arith.truncf %136 : vector<1x8x8xf32> to vector<1x8x8xbf16>
    %cst_55 = arith.constant dense<0.000000e+00> : vector<1x8x8xf32>
    %138 = tpu.matmul %137, %135, %cst_55 {dimension_numbers = #tpu.dot_dimension_numbers<[2], [1], [1], [2], [0, 0, 0, 1, 1, 2], [0], [0]>} : vector<1x8x8xbf16>, vector<1x8x8xbf16>, vector<1x8x8xf32> -> vector<1x8x8xf32>
    %c0_56 = arith.constant 0 : index
    %c0_57 = arith.constant 0 : index
    %c0_58 = arith.constant 0 : index
    %139 = vector.load %arg15[%c0_56, %c0_57, %c0_58] : memref<1x8x32xf32, #tpu.memory_space<vmem>>, vector<1x8x8xf32>
    tpu.vector_store %arg15[%c0_56, %c0_57, %c0_58], %138 {strides = array<i32>} : memref<1x8x32xf32, #tpu.memory_space<vmem>>, vector<1x8x8xf32>,
    %140 = vector.extract_strided_slice %52 {offsets = [0, 0, 8], sizes = [1, 8, 8], strides = [1, 1, 1]} : vector<1x8x32xbf16> to vector<1x8x8xbf16>
    %141 = vector.extract_strided_slice %92 {offsets = [0, 0, 8], sizes = [1, 8, 8], strides = [1, 1, 1]} : vector<1x8x32xbf16> to vector<1x8x8xbf16>
    %142 = vector.extract_strided_slice %132 {offsets = [0, 0, 8], sizes = [1, 8, 8], strides = [1, 1, 1]} : vector<1x8x32xbf16> to vector<1x8x8xbf16>
    %cst_59 = arith.constant dense<0.000000e+00> : vector<1x8x8xf32>
    %143 = tpu.matmul %140, %141, %cst_59 {dimension_numbers = #tpu.dot_dimension_numbers<[2], [2], [1], [1], [0, 0, 0, 1, 1, 1], [0], [0]>} : vector<1x8x8xbf16>, vector<1x8x8xbf16>, vector<1x8x8xf32> -> vector<1x8x8xf32>
    %144 = arith.truncf %143 : vector<1x8x8xf32> to vector<1x8x8xbf16>
    %cst_60 = arith.constant dense<0.000000e+00> : vector<1x8x8xf32>
    %145 = tpu.matmul %144, %142, %cst_60 {dimension_numbers = #tpu.dot_dimension_numbers<[2], [1], [1], [2], [0, 0, 0, 1, 1, 2], [0], [0]>} : vector<1x8x8xbf16>, vector<1x8x8xbf16>, vector<1x8x8xf32> -> vector<1x8x8xf32>
    %c0_61 = arith.constant 0 : index
    %c0_62 = arith.constant 0 : index
    %c8 = arith.constant 8 : index
    %146 = vector.load %arg15[%c0_61, %c0_62, %c8] : memref<1x8x32xf32, #tpu.memory_space<vmem>>, vector<1x8x8xf32>
    tpu.vector_store %arg15[%c0_61, %c0_62, %c8], %145 {strides = array<i32>} : memref<1x8x32xf32, #tpu.memory_space<vmem>>, vector<1x8x8xf32>,
    %147 = vector.extract_strided_slice %52 {offsets = [0, 0, 16], sizes = [1, 8, 8], strides = [1, 1, 1]} : vector<1x8x32xbf16> to vector<1x8x8xbf16>
    %148 = vector.extract_strided_slice %92 {offsets = [0, 0, 16], sizes = [1, 8, 8], strides = [1, 1, 1]} : vector<1x8x32xbf16> to vector<1x8x8xbf16>
    %149 = vector.extract_strided_slice %132 {offsets = [0, 0, 16], sizes = [1, 8, 8], strides = [1, 1, 1]} : vector<1x8x32xbf16> to vector<1x8x8xbf16>
    %cst_63 = arith.constant dense<0.000000e+00> : vector<1x8x8xf32>
    %150 = tpu.matmul %147, %148, %cst_63 {dimension_numbers = #tpu.dot_dimension_numbers<[2], [2], [1], [1], [0, 0, 0, 1, 1, 1], [0], [0]>} : vector<1x8x8xbf16>, vector<1x8x8xbf16>, vector<1x8x8xf32> -> vector<1x8x8xf32>
    %151 = arith.truncf %150 : vector<1x8x8xf32> to vector<1x8x8xbf16>
    %cst_64 = arith.constant dense<0.000000e+00> : vector<1x8x8xf32>
    %152 = tpu.matmul %151, %149, %cst_64 {dimension_numbers = #tpu.dot_dimension_numbers<[2], [1], [1], [2], [0, 0, 0, 1, 1, 2], [0], [0]>} : vector<1x8x8xbf16>, vector<1x8x8xbf16>, vector<1x8x8xf32> -> vector<1x8x8xf32>
    %c0_65 = arith.constant 0 : index
    %c0_66 = arith.constant 0 : index
    %c16 = arith.constant 16 : index
    %153 = vector.load %arg15[%c0_65, %c0_66, %c16] : memref<1x8x32xf32, #tpu.memory_space<vmem>>, vector<1x8x8xf32>
    tpu.vector_store %arg15[%c0_65, %c0_66, %c16], %152 {strides = array<i32>} : memref<1x8x32xf32, #tpu.memory_space<vmem>>, vector<1x8x8xf32>,
    %154 = vector.extract_strided_slice %52 {offsets = [0, 0, 24], sizes = [1, 8, 8], strides = [1, 1, 1]} : vector<1x8x32xbf16> to vector<1x8x8xbf16>
    %155 = vector.extract_strided_slice %92 {offsets = [0, 0, 24], sizes = [1, 8, 8], strides = [1, 1, 1]} : vector<1x8x32xbf16> to vector<1x8x8xbf16>
    %156 = vector.extract_strided_slice %132 {offsets = [0, 0, 24], sizes = [1, 8, 8], strides = [1, 1, 1]} : vector<1x8x32xbf16> to vector<1x8x8xbf16>
    %cst_67 = arith.constant dense<0.000000e+00> : vector<1x8x8xf32>
    %157 = tpu.matmul %154, %155, %cst_67 {dimension_numbers = #tpu.dot_dimension_numbers<[2], [2], [1], [1], [0, 0, 0, 1, 1, 1], [0], [0]>} : vector<1x8x8xbf16>, vector<1x8x8xbf16>, vector<1x8x8xf32> -> vector<1x8x8xf32>
    %158 = arith.truncf %157 : vector<1x8x8xf32> to vector<1x8x8xbf16>
    %cst_68 = arith.constant dense<0.000000e+00> : vector<1x8x8xf32>
    %159 = tpu.matmul %158, %156, %cst_68 {dimension_numbers = #tpu.dot_dimension_numbers<[2], [1], [1], [2], [0, 0, 0, 1, 1, 2], [0], [0]>} : vector<1x8x8xbf16>, vector<1x8x8xbf16>, vector<1x8x8xf32> -> vector<1x8x8xf32>
    %c0_69 = arith.constant 0 : index
    %c0_70 = arith.constant 0 : index
    %c24 = arith.constant 24 : index
    %160 = vector.load %arg15[%c0_69, %c0_70, %c24] : memref<1x8x32xf32, #tpu.memory_space<vmem>>, vector<1x8x8xf32>
    tpu.vector_store %arg15[%c0_69, %c0_70, %c24], %159 {strides = array<i32>} : memref<1x8x32xf32, #tpu.memory_space<vmem>>, vector<1x8x8xf32>,
    %c0_71 = arith.constant 0 : index
    %c0_72 = arith.constant 0 : index
    %c0_73 = arith.constant 0 : index
    %161 = vector.load %arg15[%c0_71, %c0_72, %c0_73] : memref<1x8x32xf32, #tpu.memory_space<vmem>>, vector<1x8x32xf32>
    %162 = vector.shape_cast %161 : vector<1x8x32xf32> to vector<8x32xf32>
    %cst_74 = arith.constant 1.250000e-01 : f32
    %163 = vector.broadcast %cst_74 : f32 to vector<8x32xf32>
    %164 = arith.mulf %162, %163 : vector<8x32xf32>
    %c0_75 = arith.constant 0 : index
    %c0_76 = arith.constant 0 : index
    %165 = vector.load %arg13[%c0_75, %c0_76] : memref<8x32xf32, #tpu.memory_space<vmem>>, vector<8x32xf32>
    %c0_77 = arith.constant 0 : index
    %c0_78 = arith.constant 0 : index
    %166 = vector.load %arg13[%c0_77, %c0_78] : memref<8x32xf32, #tpu.memory_space<vmem>>, vector<8x32xf32>
    %167 = arith.subf %164, %166 : vector<8x32xf32>
    %cst_79 = arith.constant 5.000000e-01 : f32
    %168 = vector.broadcast %cst_79 : f32 to vector<8x32xf32>
    %169 = arith.mulf %167, %168 : vector<8x32xf32>
    %170 = arith.addf %165, %169 : vector<8x32xf32>
    %cst_80 = arith.constant 5.000000e-01 : f32
    %171 = vector.broadcast %cst_80 : f32 to vector<8x32xf32>
    %172 = arith.cmpf oge, %170, %171 : vector<8x32xf32>
    %cst_81 = arith.constant 0.000000e+00 : f32
    %173 = vector.broadcast %cst_81 : f32 to vector<8x32xf32>
    %174 = arith.select %172, %173, %170 : vector<8x32xi1>, vector<8x32xf32>
    %c0_82 = arith.constant 0 : index
    %c0_83 = arith.constant 0 : index
    %175 = vector.load %arg13[%c0_82, %c0_83] : memref<8x32xf32, #tpu.memory_space<vmem>>, vector<8x32xf32>
    tpu.vector_store %arg13[%c0_82, %c0_83], %174 {strides = array<i32>} : memref<8x32xf32, #tpu.memory_space<vmem>>, vector<8x32xf32>,
    %176 = arith.extui %172 : vector<8x32xi1> to vector<8x32xi32>
    %177 = arith.sitofp %176 : vector<8x32xi32> to vector<8x32xf32>
    %178 = arith.truncf %177 : vector<8x32xf32> to vector<8x32xbf16>
    %c0_84 = arith.constant 0 : index
    %c0_85 = arith.constant 0 : index
    %179 = vector.load %arg4[%c0_84, %c0_85] : memref<32x32xbf16, #tpu.memory_space<vmem>>, vector<32x32xbf16>
    %cst_86 = arith.constant dense<0.000000e+00> : vector<8x32xf32>
    %180 = tpu.matmul %178, %179, %cst_86 {dimension_numbers = #tpu.dot_dimension_numbers<[1], [0], [0], [1], [0, 0, 1, 1], [], []>} : vector<8x32xbf16>, vector<32x32xbf16>, vector<8x32xf32> -> vector<8x32xf32>
    %c0_87 = arith.constant 0 : index
    %c0_88 = arith.constant 0 : index
    %181 = vector.load %arg8[%c0_87, %c0_88] : memref<3x32xf32, #tpu.memory_space<vmem>>, vector<1x32xf32>
    %182 = vector.broadcast %181 : vector<1x32xf32> to vector<8x32xf32>
    %183 = arith.addf %180, %182 : vector<8x32xf32>
    %c1 = arith.constant 1 : index
    %c0_89 = arith.constant 0 : index
    %184 = vector.load %arg8[%c1, %c0_89] : memref<3x32xf32, #tpu.memory_space<vmem>>, vector<1x32xf32>
    %c2 = arith.constant 2 : index
    %c0_90 = arith.constant 0 : index
    %185 = vector.load %arg8[%c2, %c0_90] : memref<3x32xf32, #tpu.memory_space<vmem>>, vector<1x32xf32>
    %cst_91 = arith.constant dense<0.000000e+00> : vector<8xf32>
    %186 = vector.multi_reduction <add>, %183, %cst_91 [1] : vector<8x32xf32> to vector<8xf32>
    %187 = vector.shape_cast %186 : vector<8xf32> to vector<8x1xf32>
    %cst_92 = arith.constant 3.200000e+01 : f32
    %188 = vector.broadcast %cst_92 : f32 to vector<8x1xf32>
    %189 = arith.divf %187, %188 : vector<8x1xf32>
    %190 = vector.broadcast %189 : vector<8x1xf32> to vector<8x32xf32>
    %191 = arith.subf %183, %190 : vector<8x32xf32>
    %192 = arith.mulf %191, %191 : vector<8x32xf32>
    %cst_93 = arith.constant dense<0.000000e+00> : vector<8xf32>
    %193 = vector.multi_reduction <add>, %192, %cst_93 [1] : vector<8x32xf32> to vector<8xf32>
    %194 = vector.shape_cast %193 : vector<8xf32> to vector<8x1xf32>
    %cst_94 = arith.constant 3.200000e+01 : f32
    %195 = vector.broadcast %cst_94 : f32 to vector<8x1xf32>
    %196 = arith.divf %194, %195 : vector<8x1xf32>
    %197 = vector.broadcast %189 : vector<8x1xf32> to vector<8x32xf32>
    %198 = arith.subf %183, %197 : vector<8x32xf32>
    %cst_95 = arith.constant 9.99999974E-6 : f32
    %199 = vector.broadcast %cst_95 : f32 to vector<8x1xf32>
    %200 = arith.addf %196, %199 : vector<8x1xf32>
    %201 = math.rsqrt %200 : vector<8x1xf32>
    %202 = vector.broadcast %201 : vector<8x1xf32> to vector<8x32xf32>
    %203 = arith.mulf %198, %202 : vector<8x32xf32>
    %204 = vector.broadcast %184 : vector<1x32xf32> to vector<8x32xf32>
    %205 = arith.mulf %203, %204 : vector<8x32xf32>
    %206 = vector.broadcast %185 : vector<1x32xf32> to vector<8x32xf32>
    %207 = arith.addf %205, %206 : vector<8x32xf32>
    %c0_96 = arith.constant 0 : index
    %c0_97 = arith.constant 0 : index
    %208 = vector.load %arg14[%c0_96, %c0_97] : memref<8x32xf32, #tpu.memory_space<vmem>>, vector<8x32xf32>
    %c0_98 = arith.constant 0 : index
    %c0_99 = arith.constant 0 : index
    %209 = vector.load %arg14[%c0_98, %c0_99] : memref<8x32xf32, #tpu.memory_space<vmem>>, vector<8x32xf32>
    %210 = arith.subf %207, %209 : vector<8x32xf32>
    %cst_100 = arith.constant 5.000000e-01 : f32
    %211 = vector.broadcast %cst_100 : f32 to vector<8x32xf32>
    %212 = arith.mulf %210, %211 : vector<8x32xf32>
    %213 = arith.addf %208, %212 : vector<8x32xf32>
    %cst_101 = arith.constant 1.000000e+00 : f32
    %214 = vector.broadcast %cst_101 : f32 to vector<8x32xf32>
    %215 = arith.cmpf oge, %213, %214 : vector<8x32xf32>
    %cst_102 = arith.constant 0.000000e+00 : f32
    %216 = vector.broadcast %cst_102 : f32 to vector<8x32xf32>
    %217 = arith.select %215, %216, %213 : vector<8x32xi1>, vector<8x32xf32>
    %c0_103 = arith.constant 0 : index
    %c0_104 = arith.constant 0 : index
    %218 = vector.load %arg14[%c0_103, %c0_104] : memref<8x32xf32, #tpu.memory_space<vmem>>, vector<8x32xf32>
    tpu.vector_store %arg14[%c0_103, %c0_104], %217 {strides = array<i32>} : memref<8x32xf32, #tpu.memory_space<vmem>>, vector<8x32xf32>,
    %219 = arith.extui %215 : vector<8x32xi1> to vector<8x32xi32>
    %220 = arith.sitofp %219 : vector<8x32xi32> to vector<8x32xf32>
    %221 = arith.addf %4, %220 : vector<8x32xf32>
    %222 = vector.shape_cast %221 : vector<8x32xf32> to vector<1x1x8x32xf32>
    %c0_105 = arith.constant 0 : index
    %c0_106 = arith.constant 0 : index
    %c0_107 = arith.constant 0 : index
    %c0_108 = arith.constant 0 : index
    %223 = vector.load %arg9[%c0_105, %c0_106, %c0_107, %c0_108] : memref<1x1x8x32xf32, #tpu.memory_space<vmem>>, vector<1x1x8x32xf32>
    tpu.vector_store %arg9[%c0_105, %c0_106, %c0_107, %c0_108], %222 {strides = array<i32>} : memref<1x1x8x32xf32, #tpu.memory_space<vmem>>, vector<1x1x8x32xf32>,
    return
  }
  func.func @transform_0(%arg0: i32, %arg1: i32) -> (i32, i32, i32, i32) {
    %c0_i32 = arith.constant 0 : i32
    %c0_i32_0 = arith.constant 0 : i32
    %c0_i32_1 = arith.constant 0 : i32
    return %arg0, %arg1, %c0_i32, %c0_i32_0 : i32, i32, i32, i32
  }
  func.func @transform_1(%arg0: i32, %arg1: i32) -> (i32, i32) {
    %c0_i32 = arith.constant 0 : i32
    %c0_i32_0 = arith.constant 0 : i32
    %c0_i32_1 = arith.constant 0 : i32
    return %c0_i32, %c0_i32_0 : i32, i32
  }
  func.func @transform_2(%arg0: i32, %arg1: i32) -> (i32, i32) {
    %c0_i32 = arith.constant 0 : i32
    %c0_i32_0 = arith.constant 0 : i32
    %c0_i32_1 = arith.constant 0 : i32
    return %c0_i32, %c0_i32_0 : i32, i32
  }
  func.func @transform_3(%arg0: i32, %arg1: i32) -> (i32, i32) {
    %c0_i32 = arith.constant 0 : i32
    %c0_i32_0 = arith.constant 0 : i32
    %c0_i32_1 = arith.constant 0 : i32
    return %c0_i32, %c0_i32_0 : i32, i32
  }
  func.func @transform_4(%arg0: i32, %arg1: i32) -> (i32, i32) {
    %c0_i32 = arith.constant 0 : i32
    %c0_i32_0 = arith.constant 0 : i32
    %c0_i32_1 = arith.constant 0 : i32
    return %c0_i32, %c0_i32_0 : i32, i32
  }
  func.func @transform_5(%arg0: i32, %arg1: i32) -> (i32, i32) {
    %c0_i32 = arith.constant 0 : i32
    %c0_i32_0 = arith.constant 0 : i32
    %c0_i32_1 = arith.constant 0 : i32
    return %c0_i32, %c0_i32_0 : i32, i32
  }
  func.func @transform_6(%arg0: i32, %arg1: i32) -> (i32, i32) {
    %c0_i32 = arith.constant 0 : i32
    %c0_i32_0 = arith.constant 0 : i32
    %c0_i32_1 = arith.constant 0 : i32
    return %c0_i32, %c0_i32_0 : i32, i32
  }
  func.func @transform_7(%arg0: i32, %arg1: i32) -> (i32, i32, i32, i32) {
    %c0_i32 = arith.constant 0 : i32
    %c0_i32_0 = arith.constant 0 : i32
    %c0_i32_1 = arith.constant 0 : i32
    return %arg0, %arg1, %c0_i32, %c0_i32_0 : i32, i32, i32, i32
  }
}

</mosaic_0001>

<llo_original>
// kernel: block_forward.3
$region0: #{block_forward.3}
  #allocation0 [shape = 'u32[]', space=smem, size = 0x4, offset = 0x4, fixed_abs, tag = 'smem constant byte address 0x4 - core index']
  #allocation1 [shape = 'u32[144,128]{1,0:T(1,128)}', space=vmem, size = 0x12000, scoped, tag = 'internal scratch']
  #allocation2 [shape = 'f32[8,128]{1,0:T(8,128)}', space=vmem, size = 0x1000, scoped, tag = 'scratch operand']
  #allocation3 [shape = 'f32[8,32]{1,0:T(8,128)}', space=vmem, size = 0x1000, scoped, tag = 'scratch operand']
  %s0 = inlined_call_operand.hbm [shape: f32[2,4,8,32], index: 0, kind: input, shape index: {}, may-alias: {0,5}]
  %s1 = inlined_call_operand.vmem [shape: bf16[32,128], index: 1, kind: input, shape index: {}]
  %s2 = inlined_call_operand.vmem [shape: f32[3,128], index: 2, kind: input, shape index: {}]
  %s3 = inlined_call_operand.vmem [shape: bf16[128,32], index: 3, kind: input, shape index: {}]
  %s4 = inlined_call_operand.vmem [shape: f32[3,32], index: 4, kind: input, shape index: {}]
  %s5 = inlined_call_operand.hbm [shape: f32[2,4,8,32], index: 5, kind: output, shape index: {}, may-alias: {0,5}]
  %s6 = sld [smem:[#allocation0]]
  $region61: #{block_forward.3} parent=0
    _
  %s8 = ssub.s32 1, %s6
  %s9 = scalar_select 0, %s8, %s6
  $region1: #{block_forward.3} parent=0
    #allocation4 [shape = 'u8[8192]{0}', space=vmem, size = 0x2000, scoped, tag = 'input window, operand 0']
    #allocation5 [shape = 's32[2]{0}', space=sflag, size = 0x8, scoped, tag = 'scoped memory for block_forward.3']
    #allocation6 [shape = 's32[2]{0}', space=sflag, size = 0x8, scoped, tag = 'scoped memory for block_forward.3']
    #allocation7 [shape = 'u8[8192]{0}', space=vmem, size = 0x2000, scoped, tag = 'output window, operand 0']
    %10 = vsyncpa [#allocation5], 0
    %s11 = scalar_lea.sflag [#allocation5], 1
    %12 = vsyncpa %s11, 0
    %13 = vsyncpa [#allocation6], 0
    %s14 = scalar_lea.sflag [#allocation6], 1
    %15 = vsyncpa %s14, 0
    loop: start=0, step=1, limit=10
    $region2: #{block_forward.3} parent=1 // loop_pre_header
      _
    $region3: #{block_forward.3} parent=1 // loop_header
      %s17 = sphi 0, %s21
      %p18 = scmp.ge.s32.totalorder %s17, 10
      %s24 = sphi 0, %s36
      %s25 = sphi 0, %s32
      %s26 = sphi 0, %s24
      %s27 = sphi 0, %s25
      %s28 = sphi 0, %s26
      %s29 = sphi 0, %s27
      %s41 = sphi 0, %s43
      %s44 = sphi 0, %s41
      %s45 = sphi 0, %s44
      %s61 = sphi 0, %s45
      %s65 = sphi 0, %s65
      %s67 = sphi 0, %s65
      %s68 = sphi 0, %s67
      %s82 = sphi 0, %s68
      %s86 = sphi 0, %s86
      %s88 = sphi 0, %s86
      %s89 = sphi 0, %s88
      %s103 = sphi 0, %s89
      %s107 = sphi 0, %s107
      %s109 = sphi 0, %s107
      %s110 = sphi 0, %s109
      %s124 = sphi 0, %s110
      %s128 = sphi 0, %s128
      %s130 = sphi 0, %s128
      %s131 = sphi 0, %s130
      %s145 = sphi 0, %s131
      %s153 = sphi 0, %s155
      %s156 = sphi 0, %s153
      %s157 = sphi 0, %s156
      %s173 = sphi 0, %s157
    $region4: #{block_forward.3} parent=1 // loop_header_branch
      %20 = sbr.rel (%p18) target = $region8
    $region5: #{block_forward.3} parent=1 // loop_body
      %s22 = ssub.s32 %s17, 1
      %s23 = ssub.s32 %s17, 2
      %s30 = sadd.s32 1, %s25
      %p31 = scmp.ge.s32.totalorder %s30, 4
      %s32 = scalar_select %p31, 0, %s30
      %s33 = sadd.s32 1, %s24
      %s34 = scalar_select %p31, %s33, %s24
      %p35 = scmp.ge.s32.totalorder %s34, 2
      %s36 = scalar_select %p35, 0, %s34
      %s37 = ssub.s32 %s24, %s36
      %s38 = ssub.s32 %s25, %s32
      %s39 = sor.u32 %s37, %s38
      %p40 = scmp.eq.s32.totalorder %s39, 0
      %s42 = sadd.s32 %s41, 1
      %s43 = scalar_select %p40, %s41, %s42
      %p46 = pneg %p40
      %p47 = scmp.eq.s32.totalorder %s17, 7
      %p48 = por %p46, %p47
      %p49 = scmp.ne.s32.totalorder %s41, %s44
      %p50 = scmp.eq.s32.totalorder %s17, 0
      %p51 = por %p49, %p50
      %p52 = scmp.ne.s32.totalorder %s41, %s44
      %p53 = scmp.eq.s32.totalorder %s22, 7
      %p54 = por %p52, %p53
      %p55 = scmp.ne.s32.totalorder %s44, %s45
      %p56 = scmp.eq.s32.totalorder %s22, 0
      %p57 = por %p55, %p56
      %p58 = scmp.ne.s32.totalorder %s44, %s45
      %p59 = scmp.eq.s32.totalorder %s23, 7
      %p60 = por %p58, %p59
      %p62 = scmp.ne.s32.totalorder %s45, %s61
      %p63 = scmp.eq.s32.totalorder %s23, 0
      %p64 = por %p62, %p63
      %s66 = sadd.s32 %s65, 1
      %p69 = scmp.eq.s32.totalorder %s17, 7
      %p70 = scmp.ne.s32.totalorder %s65, %s67
      %p71 = scmp.eq.s32.totalorder %s17, 0
      %p72 = por %p70, %p71
      %p73 = scmp.ne.s32.totalorder %s65, %s67
      %p74 = scmp.eq.s32.totalorder %s22, 7
      %p75 = por %p73, %p74
      %p76 = scmp.ne.s32.totalorder %s67, %s68
      %p77 = scmp.eq.s32.totalorder %s22, 0
      %p78 = por %p76, %p77
      %p79 = scmp.ne.s32.totalorder %s67, %s68
      %p80 = scmp.eq.s32.totalorder %s23, 7
      %p81 = por %p79, %p80
      %p83 = scmp.ne.s32.totalorder %s68, %s82
      %p84 = scmp.eq.s32.totalorder %s23, 0
      %p85 = por %p83, %p84
      %s87 = sadd.s32 %s86, 1
      %p90 = scmp.eq.s32.totalorder %s17, 7
      %p91 = scmp.ne.s32.totalorder %s86, %s88
      %p92 = scmp.eq.s32.totalorder %s17, 0
      %p93 = por %p91, %p92
      %p94 = scmp.ne.s32.totalorder %s86, %s88
      %p95 = scmp.eq.s32.totalorder %s22, 7
      %p96 = por %p94, %p95
      %p97 = scmp.ne.s32.totalorder %s88, %s89
      %p98 = scmp.eq.s32.totalorder %s22, 0
      %p99 = por %p97, %p98
      %p100 = scmp.ne.s32.totalorder %s88, %s89
      %p101 = scmp.eq.s32.totalorder %s23, 7
      %p102 = por %p100, %p101
      %p104 = scmp.ne.s32.totalorder %s89, %s103
      %p105 = scmp.eq.s32.totalorder %s23, 0
      %p106 = por %p104, %p105
      %s108 = sadd.s32 %s107, 1
      %p111 = scmp.eq.s32.totalorder %s17, 7
      %p112 = scmp.ne.s32.totalorder %s107, %s109
      %p113 = scmp.eq.s32.totalorder %s17, 0
      %p114 = por %p112, %p113
      %p115 = scmp.ne.s32.totalorder %s107, %s109
      %p116 = scmp.eq.s32.totalorder %s22, 7
      %p117 = por %p115, %p116
      %p118 = scmp.ne.s32.totalorder %s109, %s110
      %p119 = scmp.eq.s32.totalorder %s22, 0
      %p120 = por %p118, %p119
      %p121 = scmp.ne.s32.totalorder %s109, %s110
      %p122 = scmp.eq.s32.totalorder %s23, 7
      %p123 = por %p121, %p122
      %p125 = scmp.ne.s32.totalorder %s110, %s124
      %p126 = scmp.eq.s32.totalorder %s23, 0
      %p127 = por %p125, %p126
      %s129 = sadd.s32 %s128, 1
      %p132 = scmp.eq.s32.totalorder %s17, 7
      %p133 = scmp.ne.s32.totalorder %s128, %s130
      %p134 = scmp.eq.s32.totalorder %s17, 0
      %p135 = por %p133, %p134
      %p136 = scmp.ne.s32.totalorder %s128, %s130
      %p137 = scmp.eq.s32.totalorder %s22, 7
      %p138 = por %p136, %p137
      %p139 = scmp.ne.s32.totalorder %s130, %s131
      %p140 = scmp.eq.s32.totalorder %s22, 0
      %p141 = por %p139, %p140
      %p142 = scmp.ne.s32.totalorder %s130, %s131
      %p143 = scmp.eq.s32.totalorder %s23, 7
      %p144 = por %p142, %p143
      %p146 = scmp.ne.s32.totalorder %s131, %s145
      %p147 = scmp.eq.s32.totalorder %s23, 0
      %p148 = por %p146, %p147
      %s149 = ssub.s32 %s24, %s36
      %s150 = ssub.s32 %s25, %s32
      %s151 = sor.u32 %s149, %s150
      %p152 = scmp.eq.s32.totalorder %s151, 0
      %s154 = sadd.s32 %s153, 1
      %s155 = scalar_select %p152, %s153, %s154
      %p158 = pneg %p152
      %p159 = scmp.eq.s32.totalorder %s17, 7
      %p160 = por %p158, %p159
      %p161 = scmp.ne.s32.totalorder %s153, %s156
      %p162 = scmp.eq.s32.totalorder %s17, 0
      %p163 = por %p161, %p162
      %p164 = scmp.ne.s32.totalorder %s153, %s156
      %p165 = scmp.eq.s32.totalorder %s22, 7
      %p166 = por %p164, %p165
      %p167 = scmp.ne.s32.totalorder %s156, %s157
      %p168 = scmp.eq.s32.totalorder %s22, 0
      %p169 = por %p167, %p168
      %p170 = scmp.ne.s32.totalorder %s156, %s157
      %p171 = scmp.eq.s32.totalorder %s23, 7
      %p172 = por %p170, %p171
      %p174 = scmp.ne.s32.totalorder %s157, %s173
      %p175 = scmp.eq.s32.totalorder %s23, 0
      %p176 = por %p174, %p175
      %p177 = scmp.le.s32.totalorder 1, %s17
      %p178 = scmp.lt.s32.totalorder %s17, 9
      %p179 = pnand %p177, %p178
      %p180 = pneg %p179
      // Predicated region
      $region9: #{block_forward.3} parent=5 // pred_check
        _
      $region10: #{block_forward.3} parent=5 // pred_check_branch
        %182 = sbr.rel (%p179) target = $region12
      $region11: #{block_forward.3} parent=5 // pred_region
        %s183 = ssub.s32 %s17, 1
        // Predicated region
        $region13: #{block_forward.3} parent=11 // pred_check
          %p184 = pneg %p78
        $region14: #{block_forward.3} parent=11 // pred_check_branch
          %186 = sbr.rel (%p184) target = $region16
        $region15: #{block_forward.3} parent=11 // pred_region
          _
        $region16: #{block_forward.3} parent=11 // pred_fallthru
          _
        // Predicated region
        $region17: #{block_forward.3} parent=11 // pred_check
          %p187 = pneg %p99
        $region18: #{block_forward.3} parent=11 // pred_check_branch
          %189 = sbr.rel (%p187) target = $region20
        $region19: #{block_forward.3} parent=11 // pred_region
          _
        $region20: #{block_forward.3} parent=11 // pred_fallthru
          _
        // Predicated region
        $region21: #{block_forward.3} parent=11 // pred_check
          %p190 = pneg %p120
        $region22: #{block_forward.3} parent=11 // pred_check_branch
          %192 = sbr.rel (%p190) target = $region24
        $region23: #{block_forward.3} parent=11 // pred_region
          _
        $region24: #{block_forward.3} parent=11 // pred_fallthru
          _
        // Predicated region
        $region25: #{block_forward.3} parent=11 // pred_check
          %p193 = pneg %p141
        $region26: #{block_forward.3} parent=11 // pred_check_branch
          %195 = sbr.rel (%p193) target = $region28
        $region27: #{block_forward.3} parent=11 // pred_region
          _
        $region28: #{block_forward.3} parent=11 // pred_fallthru
          _
      $region12: #{block_forward.3} parent=5 // pred_fallthru
        _
      %p196 = scmp.lt.s32.totalorder %s17, 8
      // Predicated region
      $region29: #{block_forward.3} parent=5 // pred_check
        %p197 = pneg %p196
      $region30: #{block_forward.3} parent=5 // pred_check_branch
        %199 = sbr.rel (%p197) target = $region32
      $region31: #{block_forward.3} parent=5 // pred_region
        // Predicated region
        $region33: #{block_forward.3} parent=31 // pred_check
          %p200 = pneg %p51
        $region34: #{block_forward.3} parent=31 // pred_check_branch
          %202 = sbr.rel (%p200) target = $region36
        $region35: #{block_forward.3} parent=31 // pred_region
          %s203 = sand.u32 %s41, 1
          %s204 = scalar_lea.sflag [#allocation5], %s203
          %s205 = sand.u32 %s41, 1
          %s206 = smul.addr %s205, 8
          %s207 = scalar_lea.vmem [#allocation4], %s206
          %s209 = ssub.s32 128, 128
          %210 = vsyncadd %s204, %s209
          %s211 = smul.addr %s24, 4
          %s212 = sadd.s32 %s25, %s211
          %s213 = smul.addr %s212, 128
          %s214 = scalar_lea.hbm %s0, %s213
          %s216 = sshll.u32 %s207, 4
          %s217 = int_to_ptr.vmem [resolvable:$true] %s216
          %219 = dma.hbm_to_vmem [thread:$0]  %s214, 128, %s217, %s204
        $region36: #{block_forward.3} parent=31 // pred_fallthru
          _
      $region32: #{block_forward.3} parent=5 // pred_fallthru
        _
      %p220 = scmp.le.s32.totalorder 1, %s17
      %p221 = scmp.lt.s32.totalorder %s17, 9
      %p222 = pnand %p220, %p221
      %p223 = pneg %p222
      // Predicated region
      $region37: #{block_forward.3} parent=5 // pred_check
        _
      $region38: #{block_forward.3} parent=5 // pred_check_branch
        %225 = sbr.rel (%p222) target = $region40
      $region39: #{block_forward.3} parent=5 // pred_region
        %s226 = ssub.s32 %s17, 1
        %s227 = sand.u32 %s44, 1
        %s228 = scalar_lea.sflag [#allocation5], %s227
        %s229 = sand.u32 %s44, 1
        %s230 = smul.addr %s229, 8
        %s231 = scalar_lea.vmem [#allocation4], %s230
        // Predicated region
        $region41: #{block_forward.3} parent=39 // pred_check
          %p232 = pneg %p57
        $region42: #{block_forward.3} parent=39 // pred_check_branch
          %234 = sbr.rel (%p232) target = $region44
        $region43: #{block_forward.3} parent=39 // pred_region
          %235 = dma.done %s228, 128
        $region44: #{block_forward.3} parent=39 // pred_fallthru
          _
        %s236 = sand.u32 %s44, 1
        %s237 = scalar_lea.sflag [#allocation5], %s236
        %s238 = sand.u32 %s44, 1
        %s239 = smul.addr %s238, 8
        %s240 = scalar_lea.vmem [#allocation4], %s239
        %p241 = pneg %p57
        %p242 = pneg %p54
        %p243 = pneg %p78
        %p244 = pneg %p75
        %p245 = pneg %p99
        %p246 = pneg %p96
        %p247 = pneg %p120
        %p248 = pneg %p117
        %p249 = pneg %p141
        %p250 = pneg %p138
        %p251 = pneg %p169
        %p252 = pneg %p166
        %s253 = sand.u32 %s156, 1
        %s254 = scalar_lea.sflag [#allocation6], %s253
        %s255 = sand.u32 %s156, 1
        %s256 = smul.addr %s255, 8
        %s257 = scalar_lea.vmem [#allocation7], %s256
        %p259 = scmp.eq.s32.totalorder %s27, 0
        // Predicated region
        $region45: #{block_forward.3} parent=39 // pred_check
          %p260 = pneg %p259
        $region46: #{block_forward.3} parent=39 // pred_check_branch
          %262 = sbr.rel (%p260) target = $region48
        $region47: #{block_forward.3} parent=39 // pred_region
          %263 = vst [vmem:[#allocation2] sm:$0xff] 0.0
          %vm264 = vcmask 261120
          %265 = vst.msk [vmem:[#allocation3] sm:$0xff] %vm264, 0.0
        $region48: #{block_forward.3} parent=39 // pred_fallthru
          _
        %v266 = vld [vmem:[%s231] sm:$0xff]
        %v267 = vpack.c.bf16 %v266, %v266
        %v268 = vld [vmem:[%s1] sm:$0xf]
        %v269 = vld [vmem:[%s1 + $0x4] sm:$0xf]
        %v270 = vld [vmem:[%s1 + $0x8] sm:$0xf]
        %v271 = vld [vmem:[%s1 + $0xc] sm:$0xf]
        %v272 = vld [vmem:[%s2] sm:$0x7]
        %v273 = vlaneseq
        %v274 = vshrl.u32 %v273, 7
        %v275 = vsub.s32 0, %v274
        %v276 = vrot.slane %v272, %v275
        %v281 = vunpack.c.l.b16 %v268
        %v282 = vunpack.c.l.b16 %v269
        %v283 = vunpack.c.l.b16 %v270
        %v284 = vunpack.c.l.b16 %v271
        %v285 = vpack.c.b16 %v282, %v281
        %v286 = vpack.c.b16 %v284, %v283
        %vm289 = vcmask 261120
        %v291 = vsel %vm289, %v267, 0
        %293 = vmatprep.subr.bf16.mxu0 0
        %294 = vmatpush1.bf16.msra.mxu0 %v285
        %295 = vmatprep.subr.bf16.mxu0 0
        %296 = vmatpush1.bf16.msra.mxu0 %v286
        %297 = vmatprep.subr.bf16.mxu0 0
        %298 = vmatpush1.bf16.msra.mxu0 0
        %299 = vmatprep.subr.bf16.mxu0 0
        %300 = vmatpush1.bf16.msra.mxu0 0
        %301 = vmatprep.subr.bf16.mxu0 0
        %302 = vmatpush1.bf16.msra.mxu0 0
        %303 = vmatprep.subr.bf16.mxu0 0
        %304 = vmatpush1.bf16.msra.mxu0 0
        %305 = vmatprep.subr.bf16.mxu0 0
        %306 = vmatpush1.bf16.msra.mxu0 0
        %307 = vmatprep.subr.bf16.mxu0 0
        %308 = vmatpush1.bf16.msra.mxu0 0
        %309 = vmatprep.subr.bf16.mxu0 0
        %310 = vmatpush1.bf16.msra.mxu0 0
        %311 = vmatprep.subr.bf16.mxu0 0
        %312 = vmatpush1.bf16.msra.mxu0 0
        %313 = vmatprep.subr.bf16.mxu0 0
        %314 = vmatpush1.bf16.msra.mxu0 0
        %315 = vmatprep.subr.bf16.mxu0 0
        %316 = vmatpush1.bf16.msra.mxu0 0
        %317 = vmatprep.subr.bf16.mxu0 0
        %318 = vmatpush1.bf16.msra.mxu0 0
        %319 = vmatprep.subr.bf16.mxu0 0
        %320 = vmatpush1.bf16.msra.mxu0 0
        %321 = vmatprep.subr.bf16.mxu0 0
        %322 = vmatpush1.bf16.msra.mxu0 0
        %323 = vmatprep.subr.bf16.mxu0 0
        %324 = vmatpush1.bf16.msra.mxu0 0
        %325 = vmatprep.mubr.bf16.mxu0 0
        %326 = vmatmul.mubr.bf16.gmra.mrb[0].mxu0 %v291
        %v327 = vpop.f32.mrb[0].mxu0
        %v328 = vadd.f32 %v276, %v327
        %v329 = vpop.f32.mrb[0].mxu0
        %v330 = vpop.f32.mrb[0].mxu0
        %v331 = vpop.f32.mrb[0].mxu0
        %332 = vdwg.mxu0
        %333 = vadd.xlane.f32.xlu0 %v328
        %v334 = vpop.xlane.xlu0 %333
        %v335 = vrcp.pop 128.0
        %v336 = vmul.f32 %v334, %v335
        %v337 = vsub.f32 %v328, %v336
        %v338 = vmul.f32 %v337, %v337
        %339 = vadd.xlane.f32.xlu0 %v338
        %v340 = vpop.xlane.xlu0 %339
        %v341 = vmul.f32 %v340, %v335
        %v342 = vadd.f32 %v341, 1e-05
        %v343 = vrsqrt.pop %v342
        %v344 = vmul.f32 %v337, %v343
        %v345 = vlaneseq
        %v346 = vshrl.u32 %v345, 7
        %v347 = vsub.s32 1, %v346
        %v348 = vrot.slane %v272, %v347
        %v349 = vmul.f32 %v344, %v348
        %v350 = vlaneseq
        %v351 = vshrl.u32 %v350, 7
        %v352 = vsub.s32 2, %v351
        %v353 = vrot.slane %v272, %v352
        %v354 = vadd.f32 %v349, %v353
        %v355 = vld [vmem:[#allocation2] sm:$0xff]
        %v356 = vsub.f32 %v354, %v355
        %v357 = vmul.f32 %v356, 0.5
        %v358 = vadd.f32 %v355, %v357
        %vm359 = vcmp.ge.f32.partialorder %v358, 1.0
        %v360 = vsel %vm359, 0.0, %v358
        %361 = vst [vmem:[#allocation2] sm:$0xff] %v360
        %v362 = vsel %vm359, 1, 0
        %v363 = vcvt.s32.f32 %v362
        %v364 = vpack.c.bf16 %v363, %v363
        %v365 = vld [vmem:[%s3] sm:$0xf]
        %v366 = vld [vmem:[%s3 + $0x4] sm:$0xf]
        %v367 = vld [vmem:[%s3 + $0x8] sm:$0xf]
        %v368 = vld [vmem:[%s3 + $0xc] sm:$0xf]
        %v369 = vld [vmem:[%s3 + $0x10] sm:$0xf]
        %v370 = vld [vmem:[%s3 + $0x14] sm:$0xf]
        %v371 = vld [vmem:[%s3 + $0x18] sm:$0xf]
        %v372 = vld [vmem:[%s3 + $0x1c] sm:$0xf]
        %v373 = vld [vmem:[%s3 + $0x20] sm:$0xf]
        %v374 = vld [vmem:[%s3 + $0x24] sm:$0xf]
        %v375 = vld [vmem:[%s3 + $0x28] sm:$0xf]
        %v376 = vld [vmem:[%s3 + $0x2c] sm:$0xf]
        %v377 = vld [vmem:[%s3 + $0x30] sm:$0xf]
        %v378 = vld [vmem:[%s3 + $0x34] sm:$0xf]
        %v379 = vld [vmem:[%s3 + $0x38] sm:$0xf]
        %v380 = vld [vmem:[%s3 + $0x3c] sm:$0xf]
        %v381 = vld [vmem:[%s4] sm:$0x7]
        %v382 = vlaneseq
        %v383 = vshrl.u32 %v382, 7
        %v384 = vsub.s32 0, %v383
        %v385 = vrot.slane %v381, %v384
        %v402 = vunpack.c.l.b16 %v365
        %v403 = vunpack.c.l.b16 %v366
        %v404 = vunpack.c.l.b16 %v367
        %v405 = vunpack.c.l.b16 %v368
        %v406 = vunpack.c.l.b16 %v369
        %v407 = vunpack.c.l.b16 %v370
        %v408 = vunpack.c.l.b16 %v371
        %v409 = vunpack.c.l.b16 %v372
        %v410 = vunpack.c.l.b16 %v373
        %v411 = vunpack.c.l.b16 %v374
        %v412 = vunpack.c.l.b16 %v375
        %v413 = vunpack.c.l.b16 %v376
        %v414 = vunpack.c.l.b16 %v377
        %v415 = vunpack.c.l.b16 %v378
        %v416 = vunpack.c.l.b16 %v379
        %v417 = vunpack.c.l.b16 %v380
        %v418 = vpack.c.b16 %v403, %v402
        %v419 = vpack.c.b16 %v405, %v404
        %v420 = vpack.c.b16 %v407, %v406
        %v421 = vpack.c.b16 %v409, %v408
        %v422 = vpack.c.b16 %v411, %v410
        %v423 = vpack.c.b16 %v413, %v412
        %v424 = vpack.c.b16 %v415, %v414
        %v425 = vpack.c.b16 %v417, %v416
        %434 = vmatprep.subr.bf16.mxu0 0
        %435 = vmatpush1.bf16.msra.mxu0 %v418
        %436 = vmatprep.subr.bf16.mxu0 0
        %437 = vmatpush1.bf16.msra.mxu0 %v419
        %438 = vmatprep.subr.bf16.mxu0 0
        %439 = vmatpush1.bf16.msra.mxu0 %v420
        %440 = vmatprep.subr.bf16.mxu0 0
        %441 = vmatpush1.bf16.msra.mxu0 %v421
        %442 = vmatprep.subr.bf16.mxu0 0
        %443 = vmatpush1.bf16.msra.mxu0 %v422
        %444 = vmatprep.subr.bf16.mxu0 0
        %445 = vmatpush1.bf16.msra.mxu0 %v423
        %446 = vmatprep.subr.bf16.mxu0 0
        %447 = vmatpush1.bf16.msra.mxu0 %v424
        %448 = vmatprep.subr.bf16.mxu0 0
        %449 = vmatpush1.bf16.msra.mxu0 %v425
        %450 = vmatprep.subr.bf16.mxu0 0
        %451 = vmatpush1.bf16.msra.mxu0 0
        %452 = vmatprep.subr.bf16.mxu0 0
        %453 = vmatpush1.bf16.msra.mxu0 0
        %454 = vmatprep.subr.bf16.mxu0 0
        %455 = vmatpush1.bf16.msra.mxu0 0
        %456 = vmatprep.subr.bf16.mxu0 0
        %457 = vmatpush1.bf16.msra.mxu0 0
        %458 = vmatprep.subr.bf16.mxu0 0
        %459 = vmatpush1.bf16.msra.mxu0 0
        %460 = vmatprep.subr.bf16.mxu0 0
        %461 = vmatpush1.bf16.msra.mxu0 0
        %462 = vmatprep.subr.bf16.mxu0 0
        %463 = vmatpush1.bf16.msra.mxu0 0
        %464 = vmatprep.subr.bf16.mxu0 0
        %465 = vmatpush1.bf16.msra.mxu0 0
        %466 = vmatprep.mubr.bf16.mxu0 0
        %467 = vmatmul.mubr.bf16.gmra.mrb[0].mxu0 %v364
        %v468 = vpop.f32.mrb[0].mxu0
        %v469 = vadd.f32 %v385, %v468
        %v470 = vpop.f32.mrb[0].mxu0
        %v471 = vpop.f32.mrb[0].mxu0
        %v472 = vpop.f32.mrb[0].mxu0
        %473 = vdwg.mxu0
        %v474 = vsel %vm289, %v469, 0.0
        %475 = vadd.xlane.f32.xlu0 %v474
        %v476 = vpop.xlane.xlu0 %475
        %v477 = vrcp.pop 32.0
        %v478 = vmul.f32 %v476, %v477
        %v479 = vsub.f32 %v469, %v478
        %v480 = vmul.f32 %v479, %v479
        %v481 = vsel %vm289, %v480, 0.0
        %482 = vadd.xlane.f32.xlu0 %v481
        %v483 = vpop.xlane.xlu0 %482
        %v484 = vmul.f32 %v483, %v477
        %v485 = vadd.f32 %v484, 1e-05
        %v486 = vrsqrt.pop %v485
        %v487 = vmul.f32 %v479, %v486
        %v488 = vlaneseq
        %v489 = vshrl.u32 %v488, 7
        %v490 = vsub.s32 1, %v489
        %v491 = vrot.slane %v381, %v490
        %v492 = vmul.f32 %v487, %v491
        %v493 = vlaneseq
        %v494 = vshrl.u32 %v493, 7
        %v495 = vsub.s32 2, %v494
        %v496 = vrot.slane %v381, %v495
        %v497 = vadd.f32 %v492, %v496
        %v498 = vld [vmem:[#allocation3] sm:$0xff]
        %v499 = vsub.f32 %v497, %v498
        %v500 = vmul.f32 %v499, 0.5
        %v501 = vadd.f32 %v498, %v500
        %vm502 = vcmp.ge.f32.partialorder %v501, 1.0
        %v503 = vsel %vm502, 0.0, %v501
        %504 = vst.msk [vmem:[#allocation3] sm:$0xff] %vm289, %v503
        %v505 = vsel %vm502, 1, 0
        %v506 = vcvt.s32.f32 %v505
        %v507 = vadd.f32 %v266, %v506
        %508 = vst.msk [vmem:[%s257] sm:$0xff] %vm289, %v507
        %s509 = sand.u32 %s156, 1
        %s510 = scalar_lea.sflag [#allocation6], %s509
        %s511 = sand.u32 %s156, 1
        %s512 = smul.addr %s511, 8
        %s513 = scalar_lea.vmem [#allocation7], %s512
        // Predicated region
        $region49: #{block_forward.3} parent=39 // pred_check
          %p514 = pneg %p166
        $region50: #{block_forward.3} parent=39 // pred_check_branch
          %516 = sbr.rel (%p514) target = $region52
        $region51: #{block_forward.3} parent=39 // pred_region
          %s518 = ssub.s32 128, 128
          %519 = vsyncadd %s510, %s518
          %s520 = smul.addr %s26, 4
          %s521 = sadd.s32 %s27, %s520
          %s522 = smul.addr %s521, 128
          %s523 = scalar_lea.hbm %s5, %s522
          %s525 = sshll.u32 %s513, 4
          %s526 = int_to_ptr.vmem [resolvable:$true] %s525
          %528 = dma.vmem_to_hbm [thread:$0]  %s526, 128, %s523, %s510
        $region52: #{block_forward.3} parent=39 // pred_fallthru
          _
      $region40: #{block_forward.3} parent=5 // pred_fallthru
        _
      %p529 = scmp.le.s32.totalorder 2, %s17
      // Predicated region
      $region53: #{block_forward.3} parent=5 // pred_check
        %p530 = pneg %p529
      $region54: #{block_forward.3} parent=5 // pred_check_branch
        %532 = sbr.rel (%p530) target = $region56
      $region55: #{block_forward.3} parent=5 // pred_region
        %s533 = ssub.s32 %s17, 2
        // Predicated region
        $region57: #{block_forward.3} parent=55 // pred_check
          %p534 = pneg %p172
        $region58: #{block_forward.3} parent=55 // pred_check_branch
          %536 = sbr.rel (%p534) target = $region60
        $region59: #{block_forward.3} parent=55 // pred_region
          %s537 = sand.u32 %s157, 1
          %s538 = scalar_lea.sflag [#allocation6], %s537
          %s539 = sand.u32 %s157, 1
          %s540 = smul.addr %s539, 8
          %s541 = scalar_lea.vmem [#allocation7], %s540
          %542 = dma.done %s538, 128
        $region60: #{block_forward.3} parent=55 // pred_fallthru
          _
      $region56: #{block_forward.3} parent=5 // pred_fallthru
        _
    $region6: #{block_forward.3} parent=1 // loop_footer
      %s21 = sadd.s32 1, %s17
    $region7: #{block_forward.3} parent=1 // loop_footer_branch
      %16 = sbr.rel target = $region3
    $region8: #{block_forward.3} parent=1 // loop_exit
      _
    %543 = vsyncpa [#allocation5], 1
    %s544 = scalar_lea.sflag [#allocation5], 1
    %545 = vsyncpa %s544, 1
    %546 = vsyncpa [#allocation6], 1
    %s547 = scalar_lea.sflag [#allocation6], 1
    %548 = vsyncpa %s547, 1

// kernel: block_forward.2
$region0: #{block_forward.2}
  #allocation0 [shape = 'u32[]', space=smem, size = 0x4, offset = 0x4, fixed_abs, tag = 'smem constant byte address 0x4 - core index']
  #allocation1 [shape = 'u32[144,128]{1,0:T(1,128)}', space=vmem, size = 0x12000, scoped, tag = 'internal scratch']
  #allocation2 [shape = 'f32[8,32]{1,0:T(8,128)}', space=vmem, size = 0x1000, scoped, tag = 'scratch operand']
  #allocation3 [shape = 'f32[8,32]{1,0:T(8,128)}', space=vmem, size = 0x1000, scoped, tag = 'scratch operand']
  #allocation4 [shape = 'f32[8,32]{1,0:T(8,128)}', space=vmem, size = 0x1000, scoped, tag = 'scratch operand']
  #allocation5 [shape = 'f32[8,32]{1,0:T(8,128)}', space=vmem, size = 0x1000, scoped, tag = 'scratch operand']
  #allocation6 [shape = 'f32[8,32]{1,0:T(8,128)}', space=vmem, size = 0x1000, scoped, tag = 'scratch operand']
  #allocation7 [shape = 'f32[1,8,32]{2,1,0:T(8,128)}', space=vmem, size = 0x1000, scoped, tag = 'scratch operand']
  %s0 = inlined_call_operand.vmem [shape: f32[2,4,8,32], index: 0, kind: input, shape index: {}, may-alias: {0,7}]
  %s1 = inlined_call_operand.vmem [shape: bf16[32,96], index: 1, kind: input, shape index: {}]
  %s2 = inlined_call_operand.vmem [shape: bf16[32,32], index: 2, kind: input, shape index: {}]
  %s3 = inlined_call_operand.vmem [shape: f32[1,96], index: 3, kind: input, shape index: {}]
  %s4 = inlined_call_operand.vmem [shape: f32[1,96], index: 4, kind: input, shape index: {}]
  %s5 = inlined_call_operand.vmem [shape: f32[1,96], index: 5, kind: input, shape index: {}]
  %s6 = inlined_call_operand.vmem [shape: f32[3,32], index: 6, kind: input, shape index: {}]
  %s7 = inlined_call_operand.vmem [shape: f32[2,4,8,32], index: 7, kind: output, shape index: {}, may-alias: {0,7}]
  %s8 = sld [smem:[#allocation0]]
  $region65: #{block_forward.2} parent=0
    _
  %s10 = ssub.s32 1, %s8
  %s11 = scalar_select 0, %s10, %s8
  loop: start=0, step=1, limit=10
  $region2: #{block_forward.2} parent=0 // loop_pre_header
    _
  $region3: #{block_forward.2} parent=0 // loop_header
    %s13 = sphi 0, %s17
    %p14 = scmp.ge.s32.totalorder %s13, 10
    %s20 = sphi 0, %s32
    %s21 = sphi 0, %s28
    %s22 = sphi 0, %s20
    %s23 = sphi 0, %s21
    %s24 = sphi 0, %s22
    %s25 = sphi 0, %s23
    %s37 = sphi 0, %s39
    %s40 = sphi 0, %s37
    %s41 = sphi 0, %s40
    %s57 = sphi 0, %s41
    %s61 = sphi 0, %s61
    %s63 = sphi 0, %s61
    %s64 = sphi 0, %s63
    %s78 = sphi 0, %s64
    %s82 = sphi 0, %s82
    %s84 = sphi 0, %s82
    %s85 = sphi 0, %s84
    %s99 = sphi 0, %s85
    %s103 = sphi 0, %s103
    %s105 = sphi 0, %s103
    %s106 = sphi 0, %s105
    %s120 = sphi 0, %s106
    %s124 = sphi 0, %s124
    %s126 = sphi 0, %s124
    %s127 = sphi 0, %s126
    %s141 = sphi 0, %s127
    %s145 = sphi 0, %s145
    %s147 = sphi 0, %s145
    %s148 = sphi 0, %s147
    %s162 = sphi 0, %s148
    %s166 = sphi 0, %s166
    %s168 = sphi 0, %s166
    %s169 = sphi 0, %s168
    %s183 = sphi 0, %s169
    %s191 = sphi 0, %s193
    %s194 = sphi 0, %s191
    %s195 = sphi 0, %s194
    %s211 = sphi 0, %s195
  $region4: #{block_forward.2} parent=0 // loop_header_branch
    %16 = sbr.rel (%p14) target = $region8
  $region5: #{block_forward.2} parent=0 // loop_body
    %s18 = ssub.s32 %s13, 1
    %s19 = ssub.s32 %s13, 2
    %s26 = sadd.s32 1, %s21
    %p27 = scmp.ge.s32.totalorder %s26, 4
    %s28 = scalar_select %p27, 0, %s26
    %s29 = sadd.s32 1, %s20
    %s30 = scalar_select %p27, %s29, %s20
    %p31 = scmp.ge.s32.totalorder %s30, 2
    %s32 = scalar_select %p31, 0, %s30
    %s33 = ssub.s32 %s20, %s32
    %s34 = ssub.s32 %s21, %s28
    %s35 = sor.u32 %s33, %s34
    %p36 = scmp.eq.s32.totalorder %s35, 0
    %s38 = sadd.s32 %s37, 1
    %s39 = scalar_select %p36, %s37, %s38
    %p42 = pneg %p36
    %p43 = scmp.eq.s32.totalorder %s13, 7
    %p44 = por %p42, %p43
    %p45 = scmp.ne.s32.totalorder %s37, %s40
    %p46 = scmp.eq.s32.totalorder %s13, 0
    %p47 = por %p45, %p46
    %p48 = scmp.ne.s32.totalorder %s37, %s40
    %p49 = scmp.eq.s32.totalorder %s18, 7
    %p50 = por %p48, %p49
    %p51 = scmp.ne.s32.totalorder %s40, %s41
    %p52 = scmp.eq.s32.totalorder %s18, 0
    %p53 = por %p51, %p52
    %p54 = scmp.ne.s32.totalorder %s40, %s41
    %p55 = scmp.eq.s32.totalorder %s19, 7
    %p56 = por %p54, %p55
    %p58 = scmp.ne.s32.totalorder %s41, %s57
    %p59 = scmp.eq.s32.totalorder %s19, 0
    %p60 = por %p58, %p59
    %s62 = sadd.s32 %s61, 1
    %p65 = scmp.eq.s32.totalorder %s13, 7
    %p66 = scmp.ne.s32.totalorder %s61, %s63
    %p67 = scmp.eq.s32.totalorder %s13, 0
    %p68 = por %p66, %p67
    %p69 = scmp.ne.s32.totalorder %s61, %s63
    %p70 = scmp.eq.s32.totalorder %s18, 7
    %p71 = por %p69, %p70
    %p72 = scmp.ne.s32.totalorder %s63, %s64
    %p73 = scmp.eq.s32.totalorder %s18, 0
    %p74 = por %p72, %p73
    %p75 = scmp.ne.s32.totalorder %s63, %s64
    %p76 = scmp.eq.s32.totalorder %s19, 7
    %p77 = por %p75, %p76
    %p79 = scmp.ne.s32.totalorder %s64, %s78
    %p80 = scmp.eq.s32.totalorder %s19, 0
    %p81 = por %p79, %p80
    %s83 = sadd.s32 %s82, 1
    %p86 = scmp.eq.s32.totalorder %s13, 7
    %p87 = scmp.ne.s32.totalorder %s82, %s84
    %p88 = scmp.eq.s32.totalorder %s13, 0
    %p89 = por %p87, %p88
    %p90 = scmp.ne.s32.totalorder %s82, %s84
    %p91 = scmp.eq.s32.totalorder %s18, 7
    %p92 = por %p90, %p91
    %p93 = scmp.ne.s32.totalorder %s84, %s85
    %p94 = scmp.eq.s32.totalorder %s18, 0
    %p95 = por %p93, %p94
    %p96 = scmp.ne.s32.totalorder %s84, %s85
    %p97 = scmp.eq.s32.totalorder %s19, 7
    %p98 = por %p96, %p97
    %p100 = scmp.ne.s32.totalorder %s85, %s99
    %p101 = scmp.eq.s32.totalorder %s19, 0
    %p102 = por %p100, %p101
    %s104 = sadd.s32 %s103, 1
    %p107 = scmp.eq.s32.totalorder %s13, 7
    %p108 = scmp.ne.s32.totalorder %s103, %s105
    %p109 = scmp.eq.s32.totalorder %s13, 0
    %p110 = por %p108, %p109
    %p111 = scmp.ne.s32.totalorder %s103, %s105
    %p112 = scmp.eq.s32.totalorder %s18, 7
    %p113 = por %p111, %p112
    %p114 = scmp.ne.s32.totalorder %s105, %s106
    %p115 = scmp.eq.s32.totalorder %s18, 0
    %p116 = por %p114, %p115
    %p117 = scmp.ne.s32.totalorder %s105, %s106
    %p118 = scmp.eq.s32.totalorder %s19, 7
    %p119 = por %p117, %p118
    %p121 = scmp.ne.s32.totalorder %s106, %s120
    %p122 = scmp.eq.s32.totalorder %s19, 0
    %p123 = por %p121, %p122
    %s125 = sadd.s32 %s124, 1
    %p128 = scmp.eq.s32.totalorder %s13, 7
    %p129 = scmp.ne.s32.totalorder %s124, %s126
    %p130 = scmp.eq.s32.totalorder %s13, 0
    %p131 = por %p129, %p130
    %p132 = scmp.ne.s32.totalorder %s124, %s126
    %p133 = scmp.eq.s32.totalorder %s18, 7
    %p134 = por %p132, %p133
    %p135 = scmp.ne.s32.totalorder %s126, %s127
    %p136 = scmp.eq.s32.totalorder %s18, 0
    %p137 = por %p135, %p136
    %p138 = scmp.ne.s32.totalorder %s126, %s127
    %p139 = scmp.eq.s32.totalorder %s19, 7
    %p140 = por %p138, %p139
    %p142 = scmp.ne.s32.totalorder %s127, %s141
    %p143 = scmp.eq.s32.totalorder %s19, 0
    %p144 = por %p142, %p143
    %s146 = sadd.s32 %s145, 1
    %p149 = scmp.eq.s32.totalorder %s13, 7
    %p150 = scmp.ne.s32.totalorder %s145, %s147
    %p151 = scmp.eq.s32.totalorder %s13, 0
    %p152 = por %p150, %p151
    %p153 = scmp.ne.s32.totalorder %s145, %s147
    %p154 = scmp.eq.s32.totalorder %s18, 7
    %p155 = por %p153, %p154
    %p156 = scmp.ne.s32.totalorder %s147, %s148
    %p157 = scmp.eq.s32.totalorder %s18, 0
    %p158 = por %p156, %p157
    %p159 = scmp.ne.s32.totalorder %s147, %s148
    %p160 = scmp.eq.s32.totalorder %s19, 7
    %p161 = por %p159, %p160
    %p163 = scmp.ne.s32.totalorder %s148, %s162
    %p164 = scmp.eq.s32.totalorder %s19, 0
    %p165 = por %p163, %p164
    %s167 = sadd.s32 %s166, 1
    %p170 = scmp.eq.s32.totalorder %s13, 7
    %p171 = scmp.ne.s32.totalorder %s166, %s168
    %p172 = scmp.eq.s32.totalorder %s13, 0
    %p173 = por %p171, %p172
    %p174 = scmp.ne.s32.totalorder %s166, %s168
    %p175 = scmp.eq.s32.totalorder %s18, 7
    %p176 = por %p174, %p175
    %p177 = scmp.ne.s32.totalorder %s168, %s169
    %p178 = scmp.eq.s32.totalorder %s18, 0
    %p179 = por %p177, %p178
    %p180 = scmp.ne.s32.totalorder %s168, %s169
    %p181 = scmp.eq.s32.totalorder %s19, 7
    %p182 = por %p180, %p181
    %p184 = scmp.ne.s32.totalorder %s169, %s183
    %p185 = scmp.eq.s32.totalorder %s19, 0
    %p186 = por %p184, %p185
    %s187 = ssub.s32 %s20, %s32
    %s188 = ssub.s32 %s21, %s28
    %s189 = sor.u32 %s187, %s188
    %p190 = scmp.eq.s32.totalorder %s189, 0
    %s192 = sadd.s32 %s191, 1
    %s193 = scalar_select %p190, %s191, %s192
    %p196 = pneg %p190
    %p197 = scmp.eq.s32.totalorder %s13, 7
    %p198 = por %p196, %p197
    %p199 = scmp.ne.s32.totalorder %s191, %s194
    %p200 = scmp.eq.s32.totalorder %s13, 0
    %p201 = por %p199, %p200
    %p202 = scmp.ne.s32.totalorder %s191, %s194
    %p203 = scmp.eq.s32.totalorder %s18, 7
    %p204 = por %p202, %p203
    %p205 = scmp.ne.s32.totalorder %s194, %s195
    %p206 = scmp.eq.s32.totalorder %s18, 0
    %p207 = por %p205, %p206
    %p208 = scmp.ne.s32.totalorder %s194, %s195
    %p209 = scmp.eq.s32.totalorder %s19, 7
    %p210 = por %p208, %p209
    %p212 = scmp.ne.s32.totalorder %s195, %s211
    %p213 = scmp.eq.s32.totalorder %s19, 0
    %p214 = por %p212, %p213
    %p215 = scmp.le.s32.totalorder 1, %s13
    %p216 = scmp.lt.s32.totalorder %s13, 9
    %p217 = pnand %p215, %p216
    %p218 = pneg %p217
    // Predicated region
    $region9: #{block_forward.2} parent=5 // pred_check
      _
    $region10: #{block_forward.2} parent=5 // pred_check_branch
      %220 = sbr.rel (%p217) target = $region12
    $region11: #{block_forward.2} parent=5 // pred_region
      %s221 = ssub.s32 %s13, 1
      // Predicated region
      $region13: #{block_forward.2} parent=11 // pred_check
        %p222 = pneg %p74
      $region14: #{block_forward.2} parent=11 // pred_check_branch
        %224 = sbr.rel (%p222) target = $region16
      $region15: #{block_forward.2} parent=11 // pred_region
        _
      $region16: #{block_forward.2} parent=11 // pred_fallthru
        _
      // Predicated region
      $region17: #{block_forward.2} parent=11 // pred_check
        %p225 = pneg %p95
      $region18: #{block_forward.2} parent=11 // pred_check_branch
        %227 = sbr.rel (%p225) target = $region20
      $region19: #{block_forward.2} parent=11 // pred_region
        _
      $region20: #{block_forward.2} parent=11 // pred_fallthru
        _
      // Predicated region
      $region21: #{block_forward.2} parent=11 // pred_check
        %p228 = pneg %p116
      $region22: #{block_forward.2} parent=11 // pred_check_branch
        %230 = sbr.rel (%p228) target = $region24
      $region23: #{block_forward.2} parent=11 // pred_region
        _
      $region24: #{block_forward.2} parent=11 // pred_fallthru
        _
      // Predicated region
      $region25: #{block_forward.2} parent=11 // pred_check
        %p231 = pneg %p137
      $region26: #{block_forward.2} parent=11 // pred_check_branch
        %233 = sbr.rel (%p231) target = $region28
      $region27: #{block_forward.2} parent=11 // pred_region
        _
      $region28: #{block_forward.2} parent=11 // pred_fallthru
        _
      // Predicated region
      $region29: #{block_forward.2} parent=11 // pred_check
        %p234 = pneg %p158
      $region30: #{block_forward.2} parent=11 // pred_check_branch
        %236 = sbr.rel (%p234) target = $region32
      $region31: #{block_forward.2} parent=11 // pred_region
        _
      $region32: #{block_forward.2} parent=11 // pred_fallthru
        _
      // Predicated region
      $region33: #{block_forward.2} parent=11 // pred_check
        %p237 = pneg %p179
      $region34: #{block_forward.2} parent=11 // pred_check_branch
        %239 = sbr.rel (%p237) target = $region36
      $region35: #{block_forward.2} parent=11 // pred_region
        _
      $region36: #{block_forward.2} parent=11 // pred_fallthru
        _
    $region12: #{block_forward.2} parent=5 // pred_fallthru
      _
    %p240 = scmp.lt.s32.totalorder %s13, 8
    // Predicated region
    $region37: #{block_forward.2} parent=5 // pred_check
      %p241 = pneg %p240
    $region38: #{block_forward.2} parent=5 // pred_check_branch
      %243 = sbr.rel (%p241) target = $region40
    $region39: #{block_forward.2} parent=5 // pred_region
      // Predicated region
      $region41: #{block_forward.2} parent=39 // pred_check
        %p244 = pneg %p47
      $region42: #{block_forward.2} parent=39 // pred_check_branch
        %246 = sbr.rel (%p244) target = $region44
      $region43: #{block_forward.2} parent=39 // pred_region
        %p247 = scmp.lt.s32.totalorder %s20, 1
        %s248 = scalar_select %p247, %s20, 1
        %p249 = scmp.lt.s32.totalorder %s21, 3
        %s250 = scalar_select %p249, %s21, 3
        %s251 = smul.addr %s248, 4
        %s252 = sadd.s32 %s250, %s251
        %s253 = smul.addr %s252, 8
        %s254 = scalar_lea.vmem %s0, %s253
      $region44: #{block_forward.2} parent=39 // pred_fallthru
        _
    $region40: #{block_forward.2} parent=5 // pred_fallthru
      _
    %p255 = scmp.le.s32.totalorder 1, %s13
    %p256 = scmp.lt.s32.totalorder %s13, 9
    %p257 = pnand %p255, %p256
    %p258 = pneg %p257
    // Predicated region
    $region45: #{block_forward.2} parent=5 // pred_check
      _
    $region46: #{block_forward.2} parent=5 // pred_check_branch
      %260 = sbr.rel (%p257) target = $region48
    $region47: #{block_forward.2} parent=5 // pred_region
      %s261 = ssub.s32 %s13, 1
      %p262 = scmp.lt.s32.totalorder %s22, 1
      %s263 = scalar_select %p262, %s22, 1
      %p264 = scmp.lt.s32.totalorder %s23, 3
      %s265 = scalar_select %p264, %s23, 3
      %s266 = smul.addr %s263, 4
      %s267 = sadd.s32 %s265, %s266
      %s268 = smul.addr %s267, 8
      %s269 = scalar_lea.vmem %s0, %s268
      %p270 = pneg %p53
      %p271 = pneg %p50
      %p272 = pneg %p74
      %p273 = pneg %p71
      %p274 = pneg %p95
      %p275 = pneg %p92
      %p276 = pneg %p116
      %p277 = pneg %p113
      %p278 = pneg %p137
      %p279 = pneg %p134
      %p280 = pneg %p158
      %p281 = pneg %p155
      %p282 = pneg %p179
      %p283 = pneg %p176
      %p284 = pneg %p207
      %p285 = pneg %p204
      %p286 = scmp.lt.s32.totalorder %s22, 1
      %s287 = scalar_select %p286, %s22, 1
      %p288 = scmp.lt.s32.totalorder %s23, 3
      %s289 = scalar_select %p288, %s23, 3
      %s290 = smul.addr %s287, 4
      %s291 = sadd.s32 %s289, %s290
      %s292 = smul.addr %s291, 8
      %s293 = scalar_lea.vmem %s7, %s292
      %p294 = scmp.lt.s32.totalorder %s22, 1
      %s295 = scalar_select %p294, %s22, 1
      %p296 = scmp.lt.s32.totalorder %s23, 3
      %s297 = scalar_select %p296, %s23, 3
      %s298 = smul.addr %s295, 4
      %s299 = sadd.s32 %s297, %s298
      %s300 = smul.addr %s299, 8
      %s301 = scalar_lea.vmem %s0, %s300
      %p302 = scmp.lt.s32.totalorder %s22, 1
      %s303 = scalar_select %p302, %s22, 1
      %p304 = scmp.lt.s32.totalorder %s23, 3
      %s305 = scalar_select %p304, %s23, 3
      %s306 = smul.addr %s303, 4
      %s307 = sadd.s32 %s305, %s306
      %s308 = smul.addr %s307, 8
      %s309 = scalar_lea.vmem %s7, %s308
      %p311 = scmp.eq.s32.totalorder %s23, 0
      // Predicated region
      $region49: #{block_forward.2} parent=47 // pred_check
        %p312 = pneg %p311
      $region50: #{block_forward.2} parent=47 // pred_check_branch
        %314 = sbr.rel (%p312) target = $region52
      $region51: #{block_forward.2} parent=47 // pred_region
        %vm315 = vcmask 261120
        %316 = vst.msk [vmem:[#allocation2] sm:$0xff] %vm315, 0.0
        %317 = vst.msk [vmem:[#allocation3] sm:$0xff] %vm315, 0.0
        %318 = vst.msk [vmem:[#allocation4] sm:$0xff] %vm315, 0.0
        %319 = vst.msk [vmem:[#allocation5] sm:$0xff] %vm315, 0.0
        %320 = vst.msk [vmem:[#allocation6] sm:$0xff] %vm315, 0.0
      $region52: #{block_forward.2} parent=47 // pred_fallthru
        _
      %v321 = vld [vmem:[%s301] sm:$0xff]
      %v322 = vpack.c.bf16 %v321, %v321
      %v323 = vld [vmem:[%s1] sm:$0xf]
      %v324 = vld [vmem:[%s1 + $0x4] sm:$0xf]
      %v325 = vld [vmem:[%s1 + $0x8] sm:$0xf]
      %v326 = vld [vmem:[%s1 + $0xc] sm:$0xf]
      %v327 = vld [vmem:[%s3] sm:$0x1]
      %v329 = vlaneseq
      %v330 = vshrl.u32 %v329, 7
      %v331 = vsub.s32 0, %v330
      %v332 = vrot.slane %v327, %v331
      %v338 = vunpack.c.l.b16 %v323
      %v339 = vunpack.c.l.b16 %v324
      %v340 = vunpack.c.l.b16 %v325
      %v341 = vunpack.c.l.b16 %v326
      %v342 = vpack.c.b16 %v339, %v338
      %v343 = vpack.c.b16 %v341, %v340
      %vm346 = vcmask 261120
      %v348 = vsel %vm346, %v322, 0
      %350 = vmatprep.subr.bf16.mxu0 0
      %351 = vmatpush1.bf16.msra.mxu0 %v342
      %352 = vmatprep.subr.bf16.mxu0 0
      %353 = vmatpush1.bf16.msra.mxu0 %v343
      %354 = vmatprep.subr.bf16.mxu0 0
      %355 = vmatpush1.bf16.msra.mxu0 0
      %356 = vmatprep.subr.bf16.mxu0 0
      %357 = vmatpush1.bf16.msra.mxu0 0
      %358 = vmatprep.subr.bf16.mxu0 0
      %359 = vmatpush1.bf16.msra.mxu0 0
      %360 = vmatprep.subr.bf16.mxu0 0
      %361 = vmatpush1.bf16.msra.mxu0 0
      %362 = vmatprep.subr.bf16.mxu0 0
      %363 = vmatpush1.bf16.msra.mxu0 0
      %364 = vmatprep.subr.bf16.mxu0 0
      %365 = vmatpush1.bf16.msra.mxu0 0
      %366 = vmatprep.subr.bf16.mxu0 0
      %367 = vmatpush1.bf16.msra.mxu0 0
      %368 = vmatprep.subr.bf16.mxu0 0
      %369 = vmatpush1.bf16.msra.mxu0 0
      %370 = vmatprep.subr.bf16.mxu0 0
      %371 = vmatpush1.bf16.msra.mxu0 0
      %372 = vmatprep.subr.bf16.mxu0 0
      %373 = vmatpush1.bf16.msra.mxu0 0
      %374 = vmatprep.subr.bf16.mxu0 0
      %375 = vmatpush1.bf16.msra.mxu0 0
      %376 = vmatprep.subr.bf16.mxu0 0
      %377 = vmatpush1.bf16.msra.mxu0 0
      %378 = vmatprep.subr.bf16.mxu0 0
      %379 = vmatpush1.bf16.msra.mxu0 0
      %380 = vmatprep.subr.bf16.mxu0 0
      %381 = vmatpush1.bf16.msra.mxu0 0
      %382 = vmatprep.mubr.bf16.mxu0 0
      %383 = vmatmul.mubr.bf16.gmra.mrb[0].mxu0 %v348
      %v384 = vpop.f32.mrb[0].mxu0
      %v385 = vadd.f32 %v332, %v384
      %v386 = vpop.f32.mrb[0].mxu0
      %v387 = vpop.f32.mrb[0].mxu0
      %v388 = vpop.f32.mrb[0].mxu0
      %389 = vdwg.mxu0
      %v390 = vld [vmem:[%s4] sm:$0x1]
      %v391 = vld [vmem:[%s5] sm:$0x1]
      %v392 = vsel %vm346, %v385, 0.0
      %393 = vadd.xlane.f32.xlu0 %v392
      %v394 = vpop.xlane.xlu0 %393
      %v395 = vrcp.pop 32.0
      %v396 = vmul.f32 %v394, %v395
      %v397 = vsub.f32 %v385, %v396
      %v398 = vmul.f32 %v397, %v397
      %v399 = vsel %vm346, %v398, 0.0
      %400 = vadd.xlane.f32.xlu0 %v399
      %v401 = vpop.xlane.xlu0 %400
      %v402 = vmul.f32 %v401, %v395
      %v403 = vadd.f32 %v402, 1e-05
      %v404 = vrsqrt.pop %v403
      %v405 = vmul.f32 %v397, %v404
      %v407 = vlaneseq
      %v408 = vshrl.u32 %v407, 7
      %v409 = vsub.s32 0, %v408
      %v410 = vrot.slane %v390, %v409
      %v412 = vmul.f32 %v405, %v410
      %v414 = vlaneseq
      %v415 = vshrl.u32 %v414, 7
      %v416 = vsub.s32 0, %v415
      %v417 = vrot.slane %v391, %v416
      %v419 = vadd.f32 %v412, %v417
      %v420 = vld [vmem:[#allocation2] sm:$0xff]
      %v421 = vsub.f32 %v419, %v420
      %v422 = vmul.f32 %v421, 0.5
      %v423 = vadd.f32 %v420, %v422
      %vm424 = vcmp.ge.f32.partialorder %v423, 1.0
      %v425 = vsel %vm424, 0.0, %v423
      %426 = vst.msk [vmem:[#allocation2] sm:$0xff] %vm346, %v425
      %v427 = vsel %vm424, 1, 0
      %v428 = vcvt.s32.f32 %v427
      %v429 = vpack.c.bf16 %v428, %v428
      %431 = vrot.lane.b32.xlu0 %v385, 96
      %v432 = vpop.permute.xlu0 %431
      %v434 = vsel %vm346, %v432, 0.0
      %435 = vadd.xlane.f32.xlu0 %v434
      %v436 = vpop.xlane.xlu0 %435
      %v437 = vmul.f32 %v436, %v395
      %v438 = vsub.f32 %v385, %v437
      %v439 = vmul.f32 %v438, %v438
      %441 = vrot.lane.b32.xlu0 %v439, 96
      %v442 = vpop.permute.xlu0 %441
      %v444 = vsel %vm346, %v442, 0.0
      %445 = vadd.xlane.f32.xlu0 %v444
      %v446 = vpop.xlane.xlu0 %445
      %v447 = vmul.f32 %v446, %v395
      %v448 = vadd.f32 %v447, 1e-05
      %v449 = vrsqrt.pop %v448
      %v450 = vmul.f32 %v438, %v449
      %v451 = vmul.f32 %v450, %v410
      %v452 = vadd.f32 %v451, %v417
      %v453 = vld [vmem:[#allocation3] sm:$0xff]
      %455 = vrot.lane.b32.xlu0 %v453, 32
      %v456 = vpop.permute.xlu0 %455
      %v458 = vsub.f32 %v452, %v456
      %v459 = vmul.f32 %v458, 0.5
      %461 = vrot.lane.b32.xlu0 %v459, 96
      %v462 = vpop.permute.xlu0 %461
      %v464 = vadd.f32 %v453, %v462
      %vm465 = vcmp.ge.f32.partialorder %v464, 1.0
      %v466 = vsel %vm465, 0.0, %v464
      %467 = vst.msk [vmem:[#allocation3] sm:$0xff] %vm346, %v466
      %v468 = vsel %vm465, 1, 0
      %v469 = vcvt.s32.f32 %v468
      %v470 = vpack.c.bf16 %v469, %v469
      %471 = vrot.lane.b32.xlu0 %v385, 64
      %v472 = vpop.permute.xlu0 %471
      %v474 = vsel %vm346, %v472, 0.0
      %475 = vadd.xlane.f32.xlu0 %v474
      %v476 = vpop.xlane.xlu0 %475
      %v477 = vmul.f32 %v476, %v395
      %v478 = vsub.f32 %v385, %v477
      %v479 = vmul.f32 %v478, %v478
      %481 = vrot.lane.b32.xlu0 %v479, 64
      %v482 = vpop.permute.xlu0 %481
      %v484 = vsel %vm346, %v482, 0.0
      %485 = vadd.xlane.f32.xlu0 %v484
      %v486 = vpop.xlane.xlu0 %485
      %v487 = vmul.f32 %v486, %v395
      %v488 = vadd.f32 %v487, 1e-05
      %v489 = vrsqrt.pop %v488
      %v490 = vmul.f32 %v478, %v489
      %v491 = vmul.f32 %v490, %v410
      %v492 = vadd.f32 %v491, %v417
      %v493 = vld [vmem:[#allocation4] sm:$0xff]
      %495 = vrot.lane.b32.xlu0 %v493, 64
      %v496 = vpop.permute.xlu0 %495
      %v498 = vsub.f32 %v492, %v496
      %v499 = vmul.f32 %v498, 0.5
      %501 = vrot.lane.b32.xlu0 %v499, 64
      %v502 = vpop.permute.xlu0 %501
      %v504 = vadd.f32 %v493, %v502
      %vm505 = vcmp.ge.f32.partialorder %v504, 1.0
      %v506 = vsel %vm505, 0.0, %v504
      %507 = vst.msk [vmem:[#allocation4] sm:$0xff] %vm346, %v506
      %v508 = vsel %vm505, 1, 0
      %v509 = vcvt.s32.f32 %v508
      %v510 = vpack.c.bf16 %v509, %v509
      %vm511 = vcmask 64512
      %v513 = vsel %vm511, %v429, 0
      %v516 = vsel %vm511, %v470, 0
      %518 = vmatprep.subr.bf16.mxu0 0
      %519 = vmatpush1.bf16.xpose.msra.mxu0 %v516
      %520 = vmatprep.subr.bf16.mxu0 0
      %521 = vmatpush1.bf16.xpose.msra.mxu0 0
      %522 = vmatprep.subr.bf16.mxu0 0
      %523 = vmatpush1.bf16.xpose.msra.mxu0 0
      %524 = vmatprep.subr.bf16.mxu0 0
      %525 = vmatpush1.bf16.xpose.msra.mxu0 0
      %526 = vmatprep.subr.bf16.mxu0 0
      %527 = vmatpush1.bf16.xpose.msra.mxu0 0
      %528 = vmatprep.subr.bf16.mxu0 0
      %529 = vmatpush1.bf16.xpose.msra.mxu0 0
      %530 = vmatprep.subr.bf16.mxu0 0
      %531 = vmatpush1.bf16.xpose.msra.mxu0 0
      %532 = vmatprep.subr.bf16.mxu0 0
      %533 = vmatpush1.bf16.xpose.msra.mxu0 0
      %534 = vmatprep.subr.bf16.mxu0 0
      %535 = vmatpush1.bf16.xpose.msra.mxu0 0
      %536 = vmatprep.subr.bf16.mxu0 0
      %537 = vmatpush1.bf16.xpose.msra.mxu0 0
      %538 = vmatprep.subr.bf16.mxu0 0
      %539 = vmatpush1.bf16.xpose.msra.mxu0 0
      %540 = vmatprep.subr.bf16.mxu0 0
      %541 = vmatpush1.bf16.xpose.msra.mxu0 0
      %542 = vmatprep.subr.bf16.mxu0 0
      %543 = vmatpush1.bf16.xpose.msra.mxu0 0
      %544 = vmatprep.subr.bf16.mxu0 0
      %545 = vmatpush1.bf16.xpose.msra.mxu0 0
      %546 = vmatprep.subr.bf16.mxu0 0
      %547 = vmatpush1.bf16.xpose.msra.mxu0 0
      %548 = vmatprep.subr.bf16.mxu0 0
      %549 = vmatpush1.bf16.xpose.msra.mxu0 0
      %550 = vmatprep.mubr.bf16.mxu0 0
      %551 = vmatmul.mubr.bf16.gmra.mrb[0].mxu0 %v513
      %v552 = vpop.f32.mrb[0].mxu0
      %v553 = vadd.f32 0.0, %v552
      %v554 = vpop.f32.mrb[0].mxu0
      %v555 = vpop.f32.mrb[0].mxu0
      %v556 = vpop.f32.mrb[0].mxu0
      %557 = vdwg.mxu0
      %v558 = vpack.c.bf16 %v553, %v553
      %v560 = vsel %vm511, %v558, 0
      %vm562 = vcmask 1043456
      %v564 = vsel %vm562, %v510, 0
      %566 = vmatprep.subr.bf16.mxu0 0
      %567 = vmatpush1.bf16.msra.mxu0 %v564
      %568 = vmatprep.subr.bf16.mxu0 0
      %569 = vmatpush1.bf16.msra.mxu0 0
      %570 = vmatprep.subr.bf16.mxu0 0
      %571 = vmatpush1.bf16.msra.mxu0 0
      %572 = vmatprep.subr.bf16.mxu0 0
      %573 = vmatpush1.bf16.msra.mxu0 0
      %574 = vmatprep.subr.bf16.mxu0 0
      %575 = vmatpush1.bf16.msra.mxu0 0
      %576 = vmatprep.subr.bf16.mxu0 0
      %577 = vmatpush1.bf16.msra.mxu0 0
      %578 = vmatprep.subr.bf16.mxu0 0
      %579 = vmatpush1.bf16.msra.mxu0 0
      %580 = vmatprep.subr.bf16.mxu0 0
      %581 = vmatpush1.bf16.msra.mxu0 0
      %582 = vmatprep.subr.bf16.mxu0 0
      %583 = vmatpush1.bf16.msra.mxu0 0
      %584 = vmatprep.subr.bf16.mxu0 0
      %585 = vmatpush1.bf16.msra.mxu0 0
      %586 = vmatprep.subr.bf16.mxu0 0
      %587 = vmatpush1.bf16.msra.mxu0 0
      %588 = vmatprep.subr.bf16.mxu0 0
      %589 = vmatpush1.bf16.msra.mxu0 0
      %590 = vmatprep.subr.bf16.mxu0 0
      %591 = vmatpush1.bf16.msra.mxu0 0
      %592 = vmatprep.subr.bf16.mxu0 0
      %593 = vmatpush1.bf16.msra.mxu0 0
      %594 = vmatprep.subr.bf16.mxu0 0
      %595 = vmatpush1.bf16.msra.mxu0 0
      %596 = vmatprep.subr.bf16.mxu0 0
      %597 = vmatpush1.bf16.msra.mxu0 0
      %598 = vmatprep.mubr.bf16.mxu0 0
      %599 = vmatmul.mubr.bf16.gmra.mrb[0].mxu0 %v560
      %v600 = vpop.f32.mrb[0].mxu0
      %v601 = vadd.f32 0.0, %v600
      %v602 = vpop.f32.mrb[0].mxu0
      %v603 = vpop.f32.mrb[0].mxu0
      %v604 = vpop.f32.mrb[0].mxu0
      %605 = vdwg.mxu0
      %606 = vst.msk [vmem:[#allocation7] sm:$0xff] %vm511, %v601
      %608 = vrot.lane.b32.xlu0 %v429, 120
      %v609 = vpop.permute.xlu0 %608
      %611 = vrot.lane.b32.xlu0 %v470, 120
      %v612 = vpop.permute.xlu0 %611
      %v614 = vsel %vm511, %v609, 0
      %v617 = vsel %vm511, %v612, 0
      %619 = vmatprep.subr.bf16.mxu0 0
      %620 = vmatpush1.bf16.xpose.msra.mxu0 %v617
      %621 = vmatprep.subr.bf16.mxu0 0
      %622 = vmatpush1.bf16.xpose.msra.mxu0 0
      %623 = vmatprep.subr.bf16.mxu0 0
      %624 = vmatpush1.bf16.xpose.msra.mxu0 0
      %625 = vmatprep.subr.bf16.mxu0 0
      %626 = vmatpush1.bf16.xpose.msra.mxu0 0
      %627 = vmatprep.subr.bf16.mxu0 0
      %628 = vmatpush1.bf16.xpose.msra.mxu0 0
      %629 = vmatprep.subr.bf16.mxu0 0
      %630 = vmatpush1.bf16.xpose.msra.mxu0 0
      %631 = vmatprep.subr.bf16.mxu0 0
      %632 = vmatpush1.bf16.xpose.msra.mxu0 0
      %633 = vmatprep.subr.bf16.mxu0 0
      %634 = vmatpush1.bf16.xpose.msra.mxu0 0
      %635 = vmatprep.subr.bf16.mxu0 0
      %636 = vmatpush1.bf16.xpose.msra.mxu0 0
      %637 = vmatprep.subr.bf16.mxu0 0
      %638 = vmatpush1.bf16.xpose.msra.mxu0 0
      %639 = vmatprep.subr.bf16.mxu0 0
      %640 = vmatpush1.bf16.xpose.msra.mxu0 0
      %641 = vmatprep.subr.bf16.mxu0 0
      %642 = vmatpush1.bf16.xpose.msra.mxu0 0
      %643 = vmatprep.subr.bf16.mxu0 0
      %644 = vmatpush1.bf16.xpose.msra.mxu0 0
      %645 = vmatprep.subr.bf16.mxu0 0
      %646 = vmatpush1.bf16.xpose.msra.mxu0 0
      %647 = vmatprep.subr.bf16.mxu0 0
      %648 = vmatpush1.bf16.xpose.msra.mxu0 0
      %649 = vmatprep.subr.bf16.mxu0 0
      %650 = vmatpush1.bf16.xpose.msra.mxu0 0
      %651 = vmatprep.mubr.bf16.mxu0 0
      %652 = vmatmul.mubr.bf16.gmra.mrb[0].mxu0 %v614
      %v653 = vpop.f32.mrb[0].mxu0
      %v654 = vadd.f32 0.0, %v653
      %v655 = vpop.f32.mrb[0].mxu0
      %v656 = vpop.f32.mrb[0].mxu0
      %v657 = vpop.f32.mrb[0].mxu0
      %658 = vdwg.mxu0
      %v659 = vpack.c.bf16 %v654, %v654
      %661 = vrot.lane.b32.xlu0 %v510, 120
      %v662 = vpop.permute.xlu0 %661
      %v664 = vsel %vm511, %v659, 0
      %v667 = vsel %vm562, %v662, 0
      %669 = vmatprep.subr.bf16.mxu0 0
      %670 = vmatpush1.bf16.msra.mxu0 %v667
      %671 = vmatprep.subr.bf16.mxu0 0
      %672 = vmatpush1.bf16.msra.mxu0 0
      %673 = vmatprep.subr.bf16.mxu0 0
      %674 = vmatpush1.bf16.msra.mxu0 0
      %675 = vmatprep.subr.bf16.mxu0 0
      %676 = vmatpush1.bf16.msra.mxu0 0
      %677 = vmatprep.subr.bf16.mxu0 0
      %678 = vmatpush1.bf16.msra.mxu0 0
      %679 = vmatprep.subr.bf16.mxu0 0
      %680 = vmatpush1.bf16.msra.mxu0 0
      %681 = vmatprep.subr.bf16.mxu0 0
      %682 = vmatpush1.bf16.msra.mxu0 0
      %683 = vmatprep.subr.bf16.mxu0 0
      %684 = vmatpush1.bf16.msra.mxu0 0
      %685 = vmatprep.subr.bf16.mxu0 0
      %686 = vmatpush1.bf16.msra.mxu0 0
      %687 = vmatprep.subr.bf16.mxu0 0
      %688 = vmatpush1.bf16.msra.mxu0 0
      %689 = vmatprep.subr.bf16.mxu0 0
      %690 = vmatpush1.bf16.msra.mxu0 0
      %691 = vmatprep.subr.bf16.mxu0 0
      %692 = vmatpush1.bf16.msra.mxu0 0
      %693 = vmatprep.subr.bf16.mxu0 0
      %694 = vmatpush1.bf16.msra.mxu0 0
      %695 = vmatprep.subr.bf16.mxu0 0
      %696 = vmatpush1.bf16.msra.mxu0 0
      %697 = vmatprep.subr.bf16.mxu0 0
      %698 = vmatpush1.bf16.msra.mxu0 0
      %699 = vmatprep.subr.bf16.mxu0 0
      %700 = vmatpush1.bf16.msra.mxu0 0
      %701 = vmatprep.mubr.bf16.mxu0 0
      %702 = vmatmul.mubr.bf16.gmra.mrb[0].mxu0 %v664
      %v703 = vpop.f32.mrb[0].mxu0
      %v704 = vadd.f32 0.0, %v703
      %v705 = vpop.f32.mrb[0].mxu0
      %v706 = vpop.f32.mrb[0].mxu0
      %v707 = vpop.f32.mrb[0].mxu0
      %708 = vdwg.mxu0
      %710 = vrot.lane.b32.xlu0 %v704, 8
      %v711 = vpop.permute.xlu0 %710
      %vm713 = vcmask 130112
      %714 = vst.msk [vmem:[#allocation7] sm:$0xff] %vm713, %v711
      %715 = vrot.lane.b32.xlu0 %v429, 112
      %v716 = vpop.permute.xlu0 %715
      %717 = vrot.lane.b32.xlu0 %v470, 112
      %v718 = vpop.permute.xlu0 %717
      %v720 = vsel %vm511, %v716, 0
      %v723 = vsel %vm511, %v718, 0
      %725 = vmatprep.subr.bf16.mxu0 0
      %726 = vmatpush1.bf16.xpose.msra.mxu0 %v723
      %727 = vmatprep.subr.bf16.mxu0 0
      %728 = vmatpush1.bf16.xpose.msra.mxu0 0
      %729 = vmatprep.subr.bf16.mxu0 0
      %730 = vmatpush1.bf16.xpose.msra.mxu0 0
      %731 = vmatprep.subr.bf16.mxu0 0
      %732 = vmatpush1.bf16.xpose.msra.mxu0 0
      %733 = vmatprep.subr.bf16.mxu0 0
      %734 = vmatpush1.bf16.xpose.msra.mxu0 0
      %735 = vmatprep.subr.bf16.mxu0 0
      %736 = vmatpush1.bf16.xpose.msra.mxu0 0
      %737 = vmatprep.subr.bf16.mxu0 0
      %738 = vmatpush1.bf16.xpose.msra.mxu0 0
      %739 = vmatprep.subr.bf16.mxu0 0
      %740 = vmatpush1.bf16.xpose.msra.mxu0 0
      %741 = vmatprep.subr.bf16.mxu0 0
      %742 = vmatpush1.bf16.xpose.msra.mxu0 0
      %743 = vmatprep.subr.bf16.mxu0 0
      %744 = vmatpush1.bf16.xpose.msra.mxu0 0
      %745 = vmatprep.subr.bf16.mxu0 0
      %746 = vmatpush1.bf16.xpose.msra.mxu0 0
      %747 = vmatprep.subr.bf16.mxu0 0
      %748 = vmatpush1.bf16.xpose.msra.mxu0 0
      %749 = vmatprep.subr.bf16.mxu0 0
      %750 = vmatpush1.bf16.xpose.msra.mxu0 0
      %751 = vmatprep.subr.bf16.mxu0 0
      %752 = vmatpush1.bf16.xpose.msra.mxu0 0
      %753 = vmatprep.subr.bf16.mxu0 0
      %754 = vmatpush1.bf16.xpose.msra.mxu0 0
      %755 = vmatprep.subr.bf16.mxu0 0
      %756 = vmatpush1.bf16.xpose.msra.mxu0 0
      %757 = vmatprep.mubr.bf16.mxu0 0
      %758 = vmatmul.mubr.bf16.gmra.mrb[0].mxu0 %v720
      %v759 = vpop.f32.mrb[0].mxu0
      %v760 = vadd.f32 0.0, %v759
      %v761 = vpop.f32.mrb[0].mxu0
      %v762 = vpop.f32.mrb[0].mxu0
      %v763 = vpop.f32.mrb[0].mxu0
      %764 = vdwg.mxu0
      %v765 = vpack.c.bf16 %v760, %v760
      %766 = vrot.lane.b32.xlu0 %v510, 112
      %v767 = vpop.permute.xlu0 %766
      %v769 = vsel %vm511, %v765, 0
      %v772 = vsel %vm562, %v767, 0
      %774 = vmatprep.subr.bf16.mxu0 0
      %775 = vmatpush1.bf16.msra.mxu0 %v772
      %776 = vmatprep.subr.bf16.mxu0 0
      %777 = vmatpush1.bf16.msra.mxu0 0
      %778 = vmatprep.subr.bf16.mxu0 0
      %779 = vmatpush1.bf16.msra.mxu0 0
      %780 = vmatprep.subr.bf16.mxu0 0
      %781 = vmatpush1.bf16.msra.mxu0 0
      %782 = vmatprep.subr.bf16.mxu0 0
      %783 = vmatpush1.bf16.msra.mxu0 0
      %784 = vmatprep.subr.bf16.mxu0 0
      %785 = vmatpush1.bf16.msra.mxu0 0
      %786 = vmatprep.subr.bf16.mxu0 0
      %787 = vmatpush1.bf16.msra.mxu0 0
      %788 = vmatprep.subr.bf16.mxu0 0
      %789 = vmatpush1.bf16.msra.mxu0 0
      %790 = vmatprep.subr.bf16.mxu0 0
      %791 = vmatpush1.bf16.msra.mxu0 0
      %792 = vmatprep.subr.bf16.mxu0 0
      %793 = vmatpush1.bf16.msra.mxu0 0
      %794 = vmatprep.subr.bf16.mxu0 0
      %795 = vmatpush1.bf16.msra.mxu0 0
      %796 = vmatprep.subr.bf16.mxu0 0
      %797 = vmatpush1.bf16.msra.mxu0 0
      %798 = vmatprep.subr.bf16.mxu0 0
      %799 = vmatpush1.bf16.msra.mxu0 0
      %800 = vmatprep.subr.bf16.mxu0 0
      %801 = vmatpush1.bf16.msra.mxu0 0
      %802 = vmatprep.subr.bf16.mxu0 0
      %803 = vmatpush1.bf16.msra.mxu0 0
      %804 = vmatprep.subr.bf16.mxu0 0
      %805 = vmatpush1.bf16.msra.mxu0 0
      %806 = vmatprep.mubr.bf16.mxu0 0
      %807 = vmatmul.mubr.bf16.gmra.mrb[0].mxu0 %v769
      %v808 = vpop.f32.mrb[0].mxu0
      %v809 = vadd.f32 0.0, %v808
      %v810 = vpop.f32.mrb[0].mxu0
      %v811 = vpop.f32.mrb[0].mxu0
      %v812 = vpop.f32.mrb[0].mxu0
      %813 = vdwg.mxu0
      %815 = vrot.lane.b32.xlu0 %v809, 16
      %v816 = vpop.permute.xlu0 %815
      %vm818 = vcmask 195712
      %819 = vst.msk [vmem:[#allocation7] sm:$0xff] %vm818, %v816
      %820 = vrot.lane.b32.xlu0 %v429, 104
      %v821 = vpop.permute.xlu0 %820
      %822 = vrot.lane.b32.xlu0 %v470, 104
      %v823 = vpop.permute.xlu0 %822
      %v825 = vsel %vm511, %v821, 0
      %v828 = vsel %vm511, %v823, 0
      %830 = vmatprep.subr.bf16.mxu0 0
      %831 = vmatpush1.bf16.xpose.msra.mxu0 %v828
      %832 = vmatprep.subr.bf16.mxu0 0
      %833 = vmatpush1.bf16.xpose.msra.mxu0 0
      %834 = vmatprep.subr.bf16.mxu0 0
      %835 = vmatpush1.bf16.xpose.msra.mxu0 0
      %836 = vmatprep.subr.bf16.mxu0 0
      %837 = vmatpush1.bf16.xpose.msra.mxu0 0
      %838 = vmatprep.subr.bf16.mxu0 0
      %839 = vmatpush1.bf16.xpose.msra.mxu0 0
      %840 = vmatprep.subr.bf16.mxu0 0
      %841 = vmatpush1.bf16.xpose.msra.mxu0 0
      %842 = vmatprep.subr.bf16.mxu0 0
      %843 = vmatpush1.bf16.xpose.msra.mxu0 0
      %844 = vmatprep.subr.bf16.mxu0 0
      %845 = vmatpush1.bf16.xpose.msra.mxu0 0
      %846 = vmatprep.subr.bf16.mxu0 0
      %847 = vmatpush1.bf16.xpose.msra.mxu0 0
      %848 = vmatprep.subr.bf16.mxu0 0
      %849 = vmatpush1.bf16.xpose.msra.mxu0 0
      %850 = vmatprep.subr.bf16.mxu0 0
      %851 = vmatpush1.bf16.xpose.msra.mxu0 0
      %852 = vmatprep.subr.bf16.mxu0 0
      %853 = vmatpush1.bf16.xpose.msra.mxu0 0
      %854 = vmatprep.subr.bf16.mxu0 0
      %855 = vmatpush1.bf16.xpose.msra.mxu0 0
      %856 = vmatprep.subr.bf16.mxu0 0
      %857 = vmatpush1.bf16.xpose.msra.mxu0 0
      %858 = vmatprep.subr.bf16.mxu0 0
      %859 = vmatpush1.bf16.xpose.msra.mxu0 0
      %860 = vmatprep.subr.bf16.mxu0 0
      %861 = vmatpush1.bf16.xpose.msra.mxu0 0
      %862 = vmatprep.mubr.bf16.mxu0 0
      %863 = vmatmul.mubr.bf16.gmra.mrb[0].mxu0 %v825
      %v864 = vpop.f32.mrb[0].mxu0
      %v865 = vadd.f32 0.0, %v864
      %v866 = vpop.f32.mrb[0].mxu0
      %v867 = vpop.f32.mrb[0].mxu0
      %v868 = vpop.f32.mrb[0].mxu0
      %869 = vdwg.mxu0
      %v870 = vpack.c.bf16 %v865, %v865
      %871 = vrot.lane.b32.xlu0 %v510, 104
      %v872 = vpop.permute.xlu0 %871
      %v874 = vsel %vm511, %v870, 0
      %v877 = vsel %vm562, %v872, 0
      %879 = vmatprep.subr.bf16.mxu0 0
      %880 = vmatpush1.bf16.msra.mxu0 %v877
      %881 = vmatprep.subr.bf16.mxu0 0
      %882 = vmatpush1.bf16.msra.mxu0 0
      %883 = vmatprep.subr.bf16.mxu0 0
      %884 = vmatpush1.bf16.msra.mxu0 0
      %885 = vmatprep.subr.bf16.mxu0 0
      %886 = vmatpush1.bf16.msra.mxu0 0
      %887 = vmatprep.subr.bf16.mxu0 0
      %888 = vmatpush1.bf16.msra.mxu0 0
      %889 = vmatprep.subr.bf16.mxu0 0
      %890 = vmatpush1.bf16.msra.mxu0 0
      %891 = vmatprep.subr.bf16.mxu0 0
      %892 = vmatpush1.bf16.msra.mxu0 0
      %893 = vmatprep.subr.bf16.mxu0 0
      %894 = vmatpush1.bf16.msra.mxu0 0
      %895 = vmatprep.subr.bf16.mxu0 0
      %896 = vmatpush1.bf16.msra.mxu0 0
      %897 = vmatprep.subr.bf16.mxu0 0
      %898 = vmatpush1.bf16.msra.mxu0 0
      %899 = vmatprep.subr.bf16.mxu0 0
      %900 = vmatpush1.bf16.msra.mxu0 0
      %901 = vmatprep.subr.bf16.mxu0 0
      %902 = vmatpush1.bf16.msra.mxu0 0
      %903 = vmatprep.subr.bf16.mxu0 0
      %904 = vmatpush1.bf16.msra.mxu0 0
      %905 = vmatprep.subr.bf16.mxu0 0
      %906 = vmatpush1.bf16.msra.mxu0 0
      %907 = vmatprep.subr.bf16.mxu0 0
      %908 = vmatpush1.bf16.msra.mxu0 0
      %909 = vmatprep.subr.bf16.mxu0 0
      %910 = vmatpush1.bf16.msra.mxu0 0
      %911 = vmatprep.mubr.bf16.mxu0 0
      %912 = vmatmul.mubr.bf16.gmra.mrb[0].mxu0 %v874
      %v913 = vpop.f32.mrb[0].mxu0
      %v914 = vadd.f32 0.0, %v913
      %v915 = vpop.f32.mrb[0].mxu0
      %v916 = vpop.f32.mrb[0].mxu0
      %v917 = vpop.f32.mrb[0].mxu0
      %918 = vdwg.mxu0
      %920 = vrot.lane.b32.xlu0 %v914, 24
      %v921 = vpop.permute.xlu0 %920
      %vm923 = vcmask 261312
      %924 = vst.msk [vmem:[#allocation7] sm:$0xff] %vm923, %v921
      %v925 = vld [vmem:[#allocation7] sm:$0xff]
      %v926 = vmul.f32 %v925, 0.125
      %v927 = vld [vmem:[#allocation5] sm:$0xff]
      %v928 = vsub.f32 %v926, %v927
      %v929 = vmul.f32 %v928, 0.5
      %v930 = vadd.f32 %v927, %v929
      %vm931 = vcmp.ge.f32.partialorder %v930, 0.5
      %v932 = vsel %vm931, 0.0, %v930
      %933 = vst.msk [vmem:[#allocation5] sm:$0xff] %vm346, %v932
      %v934 = vsel %vm931, 1, 0
      %v935 = vcvt.s32.f32 %v934
      %v936 = vpack.c.bf16 %v935, %v935
      %v937 = vld [vmem:[%s2] sm:$0xf]
      %v938 = vld [vmem:[%s2 + $0x4] sm:$0xf]
      %v939 = vld [vmem:[%s2 + $0x8] sm:$0xf]
      %v940 = vld [vmem:[%s2 + $0xc] sm:$0xf]
      %v941 = vld [vmem:[%s6] sm:$0x1]
      %v942 = vlaneseq
      %v943 = vshrl.u32 %v942, 7
      %v944 = vsub.s32 0, %v943
      %v945 = vrot.slane %v941, %v944
      %v950 = vunpack.c.l.b16 %v937
      %v951 = vunpack.c.l.b16 %v938
      %v952 = vunpack.c.l.b16 %v939
      %v953 = vunpack.c.l.b16 %v940
      %v954 = vpack.c.b16 %v951, %v950
      %v955 = vpack.c.b16 %v953, %v952
      %v959 = vsel %vm346, %v936, 0
      %961 = vmatprep.subr.bf16.mxu0 0
      %962 = vmatpush1.bf16.msra.mxu0 %v954
      %963 = vmatprep.subr.bf16.mxu0 0
      %964 = vmatpush1.bf16.msra.mxu0 %v955
      %965 = vmatprep.subr.bf16.mxu0 0
      %966 = vmatpush1.bf16.msra.mxu0 0
      %967 = vmatprep.subr.bf16.mxu0 0
      %968 = vmatpush1.bf16.msra.mxu0 0
      %969 = vmatprep.subr.bf16.mxu0 0
      %970 = vmatpush1.bf16.msra.mxu0 0
      %971 = vmatprep.subr.bf16.mxu0 0
      %972 = vmatpush1.bf16.msra.mxu0 0
      %973 = vmatprep.subr.bf16.mxu0 0
      %974 = vmatpush1.bf16.msra.mxu0 0
      %975 = vmatprep.subr.bf16.mxu0 0
      %976 = vmatpush1.bf16.msra.mxu0 0
      %977 = vmatprep.subr.bf16.mxu0 0
      %978 = vmatpush1.bf16.msra.mxu0 0
      %979 = vmatprep.subr.bf16.mxu0 0
      %980 = vmatpush1.bf16.msra.mxu0 0
      %981 = vmatprep.subr.bf16.mxu0 0
      %982 = vmatpush1.bf16.msra.mxu0 0
      %983 = vmatprep.subr.bf16.mxu0 0
      %984 = vmatpush1.bf16.msra.mxu0 0
      %985 = vmatprep.subr.bf16.mxu0 0
      %986 = vmatpush1.bf16.msra.mxu0 0
      %987 = vmatprep.subr.bf16.mxu0 0
      %988 = vmatpush1.bf16.msra.mxu0 0
      %989 = vmatprep.subr.bf16.mxu0 0
      %990 = vmatpush1.bf16.msra.mxu0 0
      %991 = vmatprep.subr.bf16.mxu0 0
      %992 = vmatpush1.bf16.msra.mxu0 0
      %993 = vmatprep.mubr.bf16.mxu0 0
      %994 = vmatmul.mubr.bf16.gmra.mrb[0].mxu0 %v959
      %v995 = vpop.f32.mrb[0].mxu0
      %v996 = vadd.f32 %v945, %v995
      %v997 = vpop.f32.mrb[0].mxu0
      %v998 = vpop.f32.mrb[0].mxu0
      %v999 = vpop.f32.mrb[0].mxu0
      %1000 = vdwg.mxu0
      %v1001 = vld [vmem:[%s6 + $0x1] sm:$0x1]
      %v1002 = vld [vmem:[%s6 + $0x2] sm:$0x1]
      %v1003 = vsel %vm346, %v996, 0.0
      %1004 = vadd.xlane.f32.xlu0 %v1003
      %v1005 = vpop.xlane.xlu0 %1004
      %v1006 = vmul.f32 %v1005, %v395
      %v1007 = vsub.f32 %v996, %v1006
      %v1008 = vmul.f32 %v1007, %v1007
      %v1009 = vsel %vm346, %v1008, 0.0
      %1010 = vadd.xlane.f32.xlu0 %v1009
      %v1011 = vpop.xlane.xlu0 %1010
      %v1012 = vmul.f32 %v1011, %v395
      %v1013 = vadd.f32 %v1012, 1e-05
      %v1014 = vrsqrt.pop %v1013
      %v1015 = vmul.f32 %v1007, %v1014
      %v1016 = vlaneseq
      %v1017 = vshrl.u32 %v1016, 7
      %v1018 = vsub.s32 0, %v1017
      %v1019 = vrot.slane %v1001, %v1018
      %v1020 = vmul.f32 %v1015, %v1019
      %v1021 = vlaneseq
      %v1022 = vshrl.u32 %v1021, 7
      %v1023 = vsub.s32 0, %v1022
      %v1024 = vrot.slane %v1002, %v1023
      %v1025 = vadd.f32 %v1020, %v1024
      %v1026 = vld [vmem:[#allocation6] sm:$0xff]
      %v1027 = vsub.f32 %v1025, %v1026
      %v1028 = vmul.f32 %v1027, 0.5
      %v1029 = vadd.f32 %v1026, %v1028
      %vm1030 = vcmp.ge.f32.partialorder %v1029, 1.0
      %v1031 = vsel %vm1030, 0.0, %v1029
      %1032 = vst.msk [vmem:[#allocation6] sm:$0xff] %vm346, %v1031
      %v1033 = vsel %vm1030, 1, 0
      %v1034 = vcvt.s32.f32 %v1033
      %v1035 = vadd.f32 %v321, %v1034
      %1036 = vst.msk [vmem:[%s309] sm:$0xff] %vm346, %v1035
      %p1037 = scmp.lt.s32.totalorder %s22, 1
      %s1038 = scalar_select %p1037, %s22, 1
      %p1039 = scmp.lt.s32.totalorder %s23, 3
      %s1040 = scalar_select %p1039, %s23, 3
      %s1041 = smul.addr %s1038, 4
      %s1042 = sadd.s32 %s1040, %s1041
      %s1043 = smul.addr %s1042, 8
      %s1044 = scalar_lea.vmem %s7, %s1043
      // Predicated region
      $region53: #{block_forward.2} parent=47 // pred_check
        %p1045 = pneg %p204
      $region54: #{block_forward.2} parent=47 // pred_check_branch
        %1047 = sbr.rel (%p1045) target = $region56
      $region55: #{block_forward.2} parent=47 // pred_region
        _
      $region56: #{block_forward.2} parent=47 // pred_fallthru
        _
    $region48: #{block_forward.2} parent=5 // pred_fallthru
      _
    %p1048 = scmp.le.s32.totalorder 2, %s13
    // Predicated region
    $region57: #{block_forward.2} parent=5 // pred_check
      %p1049 = pneg %p1048
    $region58: #{block_forward.2} parent=5 // pred_check_branch
      %1051 = sbr.rel (%p1049) target = $region60
    $region59: #{block_forward.2} parent=5 // pred_region
      %s1052 = ssub.s32 %s13, 2
      // Predicated region
      $region61: #{block_forward.2} parent=59 // pred_check
        %p1053 = pneg %p210
      $region62: #{block_forward.2} parent=59 // pred_check_branch
        %1055 = sbr.rel (%p1053) target = $region64
      $region63: #{block_forward.2} parent=59 // pred_region
        %p1056 = scmp.lt.s32.totalorder %s24, 1
        %s1057 = scalar_select %p1056, %s24, 1
        %p1058 = scmp.lt.s32.totalorder %s25, 3
        %s1059 = scalar_select %p1058, %s25, 3
        %s1060 = smul.addr %s1057, 4
        %s1061 = sadd.s32 %s1059, %s1060
        %s1062 = smul.addr %s1061, 8
        %s1063 = scalar_lea.vmem %s7, %s1062
      $region64: #{block_forward.2} parent=59 // pred_fallthru
        _
    $region60: #{block_forward.2} parent=5 // pred_fallthru
      _
  $region6: #{block_forward.2} parent=0 // loop_footer
    %s17 = sadd.s32 1, %s13
  $region7: #{block_forward.2} parent=0 // loop_footer_branch
    %12 = sbr.rel target = $region3
  $region8: #{block_forward.2} parent=0 // loop_exit
    _

</llo_original>
